<compile_context>
chip_gen: v7x
topology: tpu7x:2x2x1
jax: 0.10.0
libtpu: 0.0.40
codegen_flags: <defaults>
</compile_context>

<pallas_src>
import jax
import jax.numpy as jnp
from jax.experimental import pallas as pl
from jax.experimental.pallas import tpu as pltpu


def classifier_kernel(x_ref, w1_ref, b1_ref, w2_ref, b2_ref,
                      w3_ref, b3_ref, w4_ref, b4_ref, w5_ref, b5_ref,
                      out_ref):
    f32 = jnp.float32
    xw = x_ref[...]                                   # (TB, Lc1, 9) im2col windows
    TB, Lc1, KC = xw.shape
    Lc2 = Lc1 - 2

    # ---- Conv1d(3,16,3) + ReLU: a single MXU matmul over im2col windows ----
    # (Dropout = identity in eval mode.)
    x2d = xw.reshape(TB * Lc1, KC)                                    # (TB*Lc1, 9)
    h1 = jnp.dot(x2d, w1_ref[...], preferred_element_type=f32)        # (TB*Lc1, 16)
    h1 = jnp.maximum(h1 + b1_ref[...], 0.0)
    h1 = h1.reshape(TB, Lc1, 16)

    # ---- Conv1d(16,1,3) + ReLU: accumulate per-tap products, ONE lane reduce ----
    w2 = w2_ref[...]                                                  # (3, 16)
    acc = (h1[:, 0:Lc2, :] * w2[0]
           + h1[:, 1:Lc2 + 1, :] * w2[1]
           + h1[:, 2:Lc2 + 2, :] * w2[2])                             # (TB, Lc2, 16)
    h2 = jnp.maximum(jnp.sum(acc, axis=-1) + b2_ref[...], 0.0)        # (TB, Lc2)

    # ---- Linear stack on the MXU (f32 accumulation) ----
    h3 = jnp.maximum(
        jnp.dot(h2, w3_ref[...], preferred_element_type=f32) + b3_ref[...], 0.0)
    h4 = jnp.maximum(
        jnp.dot(h3, w4_ref[...], preferred_element_type=f32) + b4_ref[...], 0.0)
    logits = jnp.dot(h4, w5_ref[...], preferred_element_type=f32) + b5_ref[...]

    # ---- Softmax over class dim (torch Softmax(2) then squeeze(1)) ----
    m = jnp.max(logits, axis=-1, keepdims=True)
    e = jnp.exp(logits - m)
    inv = pl.reciprocal(jnp.sum(e, axis=-1, keepdims=True), approx=True)
    out_ref[...] = e * inv


def _pick_batch_tile(B):
    """Batch tile: a multiple of 8 that divides B (no padded garbage rows),
    preferring exactly 2 grid steps (v7x megacore), capped at 512 rows/step."""
    if B % 8 != 0:
        return B                                   # one full tile, no padding
    candidates = [t for t in range(8, min(B, 512) + 1, 8) if B % t == 0]
    if not candidates:
        return B
    half = B // 2
    if B % 16 == 0 and half in candidates:
        return half                                # 2 parallel grid steps
    return candidates[-1]


def prepare_params(params):
    """One-time weight preprocessing (hoisted out of the per-call hot path).

    PyTorch layouts -> matmul layouts:
      conv1 (16,3,3)=(O,C,K) -> (K*C, O) = (9,16)   [matches im2col column order]
      conv2 (1,16,3)=(O,C,K) -> (K, C)   = (3,16)
      linears (out,in)       -> (in,out)
    """
    w1, b1, w2, b2, w3, b3, w4, b4, w5, b5 = params
    w1f = jnp.transpose(w1, (2, 1, 0)).reshape(9, 16).astype(jnp.float32)
    w2t = jnp.transpose(w2[0], (1, 0)).astype(jnp.float32)
    return (
        w1f, b1.reshape(1, 16).astype(jnp.float32),
        w2t, b2.reshape(1, 1).astype(jnp.float32),
        w3.T.astype(jnp.float32), b3.reshape(1, 256).astype(jnp.float32),
        w4.T.astype(jnp.float32), b4.reshape(1, 128).astype(jnp.float32),
        w5.T.astype(jnp.float32), b5.reshape(1, 3).astype(jnp.float32),
    )


def classifier_forward(x_ncl, prepared, *, batch_tile=None):
    """x_ncl: (B, 3, L) float32 (PyTorch NCW layout). prepared: prepare_params(...)."""
    w1f, b1, w2t, b2, w3t, b3, w4t, b4, w5t, b5 = prepared
    B, C, L = x_ncl.shape
    Lc1 = L - 2

    # im2col in the wrapper: (B, Lc1, taps*cin) windows so conv1 is a single
    # flat MXU matmul in the kernel (no per-tap work, no raw-input slicing).
    x_nlc = jnp.transpose(x_ncl, (0, 2, 1)).astype(jnp.float32)       # (B, L, 3)
    xw = jnp.concatenate([x_nlc[:, k:k + Lc1, :] for k in range(3)],
                         axis=-1)                                     # (B, Lc1, 9)

    tb = batch_tile if batch_tile is not None else _pick_batch_tile(B)
    assert tb >= 1 and B % tb == 0 and (tb == B or tb % 8 == 0), (tb, B)
    grid = (B // tb,)

    def const_spec(a):
        nd = a.ndim
        return pl.BlockSpec(a.shape, lambda b, _nd=nd: (0,) * _nd)

    args = (xw, w1f, b1, w2t, b2, w3t, b3, w4t, b4, w5t, b5)
    in_specs = [pl.BlockSpec((tb, Lc1, 3 * C), lambda b: (b, 0, 0))]   # batch-tiled input
    in_specs += [const_spec(a) for a in args[1:]]                      # resident weights
    out_spec = pl.BlockSpec((tb, 3), lambda b: (b, 0))

    return pl.pallas_call(
        classifier_kernel,
        out_shape=jax.ShapeDtypeStruct((B, 3), jnp.float32),
        grid=grid,
        in_specs=in_specs,
        out_specs=out_spec,
        compiler_params=pltpu.CompilerParams(
            dimension_semantics=("parallel",),
            vmem_limit_bytes=64 * 1024 * 1024),
    )(*args)


def make_params(key, sample_length):
    """Deterministic synthetic parameters (PyTorch-style shapes)."""
    ks = jax.random.split(key, 10)

    def u(k, shape, fan_in):
        bound = 1.0 / jnp.sqrt(fan_in)
        return jax.random.uniform(k, shape, jnp.float32, -bound, bound)

    lin_in = sample_length - 4
    return (
        u(ks[0], (16, 3, 3), 3 * 3),   u(ks[1], (16,), 3 * 3),       # Conv1d(3,16,3)
        u(ks[2], (1, 16, 3), 16 * 3),  u(ks[3], (1,), 16 * 3),       # Conv1d(16,1,3)
        u(ks[4], (256, lin_in), lin_in), u(ks[5], (256,), lin_in),   # Linear(L-4,256)
        u(ks[6], (128, 256), 256),     u(ks[7], (128,), 256),        # Linear(256,128)
        u(ks[8], (3, 128), 128),       u(ks[9], (3,), 128),          # Linear(128,3)
    )


def reference_forward(x_ncl, params):
    """Pure-JAX reference of the same math (eval-mode dropout = identity)."""
    w1, b1, w2, b2, w3, b3, w4, b4, w5, b5 = params
    dn = ("NCW", "OIW", "NCW")
    h1 = jax.lax.conv_general_dilated(x_ncl, w1, (1,), "VALID",
                                      dimension_numbers=dn) + b1[None, :, None]
    h1 = jnp.maximum(h1, 0.0)
    h2 = jax.lax.conv_general_dilated(h1, w2, (1,), "VALID",
                                      dimension_numbers=dn) + b2[None, :, None]
    h2 = jnp.maximum(h2, 0.0)                       # (B, 1, L-4)
    h3 = jnp.maximum(h2 @ w3.T + b3, 0.0)           # (B, 1, 256)
    h4 = jnp.maximum(h3 @ w4.T + b4, 0.0)           # (B, 1, 128)
    logits = h4 @ w5.T + b5                         # (B, 1, 3)
    return jax.nn.softmax(logits, axis=2)[:, 0, :]  # (B, 3)


if __name__ == "__main__":
    B = 16
    sample_length = 20                               # L; Linear input = L - 4 = 16

    key = jax.random.PRNGKey(0)
    k_x, k_p = jax.random.split(key)
    x = jax.random.normal(k_x, (B, 3, sample_length), jnp.float32)
    params = make_params(k_p, sample_length)
    prepared = prepare_params(params)                # hoisted one-time preprocessing

    fwd = jax.jit(classifier_forward, static_argnames=("batch_tile",))
    out = fwd(x, prepared, batch_tile=8)             # 2 parallel batch steps
    out = jax.block_until_ready(out)

    ref = reference_forward(x, params)
    assert out.shape == (B, 3), out.shape
    assert bool(jnp.all(jnp.isfinite(out)))
    assert bool(jnp.allclose(out, ref, atol=1e-3, rtol=1e-3)), (out, ref)

    print("KERNEL_OK")
</pallas_src>

<mosaic_0001>
module attributes {stable_mosaic.version = 11 : i64} {
  func.func @classifier_kernel(%arg0: i32, %arg1: memref<8x18x9xf32, #tpu.memory_space<vmem>>, %arg2: memref<9x16xf32, #tpu.memory_space<vmem>>, %arg3: memref<1x16xf32, #tpu.memory_space<vmem>>, %arg4: memref<3x16xf32, #tpu.memory_space<vmem>>, %arg5: memref<1x1xf32, #tpu.memory_space<vmem>>, %arg6: memref<16x256xf32, #tpu.memory_space<vmem>>, %arg7: memref<1x256xf32, #tpu.memory_space<vmem>>, %arg8: memref<256x128xf32, #tpu.memory_space<vmem>>, %arg9: memref<1x128xf32, #tpu.memory_space<vmem>>, %arg10: memref<128x3xf32, #tpu.memory_space<vmem>>, %arg11: memref<1x3xf32, #tpu.memory_space<vmem>>, %arg12: memref<8x3xf32, #tpu.memory_space<vmem>>) attributes {dimension_semantics = [#tpu.dimension_semantics<parallel>], iteration_bounds = array<i64: 2>, scalar_prefetch = 0 : i64, scratch_operands = 0 : i64, tpu.core_type = #tpu.core_type<tc>, window_params = [{transform_indices = @transform_0, window_bounds = array<i64: 8, 18, 9>}, {pipeline_mode = #tpu.pipeline_mode<synchronous>, transform_indices = @transform_1, window_bounds = array<i64: 9, 16>}, {pipeline_mode = #tpu.pipeline_mode<synchronous>, transform_indices = @transform_2, window_bounds = array<i64: 1, 16>}, {pipeline_mode = #tpu.pipeline_mode<synchronous>, transform_indices = @transform_3, window_bounds = array<i64: 3, 16>}, {pipeline_mode = #tpu.pipeline_mode<synchronous>, transform_indices = @transform_4, window_bounds = array<i64: 1, 1>}, {pipeline_mode = #tpu.pipeline_mode<synchronous>, transform_indices = @transform_5, window_bounds = array<i64: 16, 256>}, {pipeline_mode = #tpu.pipeline_mode<synchronous>, transform_indices = @transform_6, window_bounds = array<i64: 1, 256>}, {pipeline_mode = #tpu.pipeline_mode<synchronous>, transform_indices = @transform_7, window_bounds = array<i64: 256, 128>}, {pipeline_mode = #tpu.pipeline_mode<synchronous>, transform_indices = @transform_8, window_bounds = array<i64: 1, 128>}, {pipeline_mode = #tpu.pipeline_mode<synchronous>, transform_indices = @transform_9, window_bounds = array<i64: 128, 3>}, {pipeline_mode = #tpu.pipeline_mode<synchronous>, transform_indices = @transform_10, window_bounds = array<i64: 1, 3>}, {transform_indices = @transform_11, window_bounds = array<i64: 8, 3>}]} {
    %c0 = arith.constant 0 : index
    %c0_0 = arith.constant 0 : index
    %c0_1 = arith.constant 0 : index
    %0 = vector.load %arg1[%c0, %c0_0, %c0_1] : memref<8x18x9xf32, #tpu.memory_space<vmem>>, vector<8x18x9xf32>
    %1 = vector.shape_cast %0 : vector<8x18x9xf32> to vector<144x9xf32>
    %c0_2 = arith.constant 0 : index
    %c0_3 = arith.constant 0 : index
    %2 = vector.load %arg2[%c0_2, %c0_3] : memref<9x16xf32, #tpu.memory_space<vmem>>, vector<9x16xf32>
    %cst = arith.constant dense<0.000000e+00> : vector<144x16xf32>
    %3 = tpu.matmul %1, %2, %cst {dimension_numbers = #tpu.dot_dimension_numbers<[1], [0], [0], [1], [0, 0, 1, 1], [], []>} : vector<144x9xf32>, vector<9x16xf32>, vector<144x16xf32> -> vector<144x16xf32>
    %c0_4 = arith.constant 0 : index
    %c0_5 = arith.constant 0 : index
    %4 = vector.load %arg3[%c0_4, %c0_5] : memref<1x16xf32, #tpu.memory_space<vmem>>, vector<1x16xf32>
    %5 = vector.broadcast %4 : vector<1x16xf32> to vector<144x16xf32>
    %6 = arith.addf %3, %5 : vector<144x16xf32>
    %cst_6 = arith.constant 0.000000e+00 : f32
    %7 = vector.broadcast %cst_6 : f32 to vector<144x16xf32>
    %8 = arith.maximumf %6, %7 : vector<144x16xf32>
    %9 = vector.shape_cast %8 : vector<144x16xf32> to vector<8x18x16xf32>
    %c0_7 = arith.constant 0 : index
    %c0_8 = arith.constant 0 : index
    %10 = vector.load %arg4[%c0_7, %c0_8] : memref<3x16xf32, #tpu.memory_space<vmem>>, vector<3x16xf32>
    %11 = vector.extract_strided_slice %9 {offsets = [0, 0, 0], sizes = [8, 16, 16], strides = [1, 1, 1]} : vector<8x18x16xf32> to vector<8x16x16xf32>
    %12 = vector.extract_strided_slice %10 {offsets = [0, 0], sizes = [1, 16], strides = [1, 1]} : vector<3x16xf32> to vector<1x16xf32>
    %13 = vector.shape_cast %12 : vector<1x16xf32> to vector<16xf32>
    %14 = vector.shape_cast %13 : vector<16xf32> to vector<1x1x16xf32>
    %15 = vector.broadcast %14 : vector<1x1x16xf32> to vector<8x16x16xf32>
    %16 = arith.mulf %11, %15 : vector<8x16x16xf32>
    %17 = vector.extract_strided_slice %9 {offsets = [0, 1, 0], sizes = [8, 16, 16], strides = [1, 1, 1]} : vector<8x18x16xf32> to vector<8x16x16xf32>
    %18 = vector.extract_strided_slice %10 {offsets = [1, 0], sizes = [1, 16], strides = [1, 1]} : vector<3x16xf32> to vector<1x16xf32>
    %19 = vector.shape_cast %18 : vector<1x16xf32> to vector<16xf32>
    %20 = vector.shape_cast %19 : vector<16xf32> to vector<1x1x16xf32>
    %21 = vector.broadcast %20 : vector<1x1x16xf32> to vector<8x16x16xf32>
    %22 = arith.mulf %17, %21 : vector<8x16x16xf32>
    %23 = arith.addf %16, %22 : vector<8x16x16xf32>
    %24 = vector.extract_strided_slice %9 {offsets = [0, 2, 0], sizes = [8, 16, 16], strides = [1, 1, 1]} : vector<8x18x16xf32> to vector<8x16x16xf32>
    %25 = vector.extract_strided_slice %10 {offsets = [2, 0], sizes = [1, 16], strides = [1, 1]} : vector<3x16xf32> to vector<1x16xf32>
    %26 = vector.shape_cast %25 : vector<1x16xf32> to vector<16xf32>
    %27 = vector.shape_cast %26 : vector<16xf32> to vector<1x1x16xf32>
    %28 = vector.broadcast %27 : vector<1x1x16xf32> to vector<8x16x16xf32>
    %29 = arith.mulf %24, %28 : vector<8x16x16xf32>
    %30 = arith.addf %23, %29 : vector<8x16x16xf32>
    %cst_9 = arith.constant dense<0.000000e+00> : vector<8x16xf32>
    %31 = vector.multi_reduction <add>, %30, %cst_9 [2] : vector<8x16x16xf32> to vector<8x16xf32>
    %c0_10 = arith.constant 0 : index
    %c0_11 = arith.constant 0 : index
    %32 = vector.load %arg5[%c0_10, %c0_11] : memref<1x1xf32, #tpu.memory_space<vmem>>, vector<1x1xf32>
    %33 = vector.broadcast %32 : vector<1x1xf32> to vector<8x16xf32>
    %34 = arith.addf %31, %33 : vector<8x16xf32>
    %cst_12 = arith.constant 0.000000e+00 : f32
    %35 = vector.broadcast %cst_12 : f32 to vector<8x16xf32>
    %36 = arith.maximumf %34, %35 : vector<8x16xf32>
    %c0_13 = arith.constant 0 : index
    %c0_14 = arith.constant 0 : index
    %37 = vector.load %arg6[%c0_13, %c0_14] : memref<16x256xf32, #tpu.memory_space<vmem>>, vector<16x256xf32>
    %cst_15 = arith.constant dense<0.000000e+00> : vector<8x256xf32>
    %38 = tpu.matmul %36, %37, %cst_15 {dimension_numbers = #tpu.dot_dimension_numbers<[1], [0], [0], [1], [0, 0, 1, 1], [], []>} : vector<8x16xf32>, vector<16x256xf32>, vector<8x256xf32> -> vector<8x256xf32>
    %c0_16 = arith.constant 0 : index
    %c0_17 = arith.constant 0 : index
    %39 = vector.load %arg7[%c0_16, %c0_17] : memref<1x256xf32, #tpu.memory_space<vmem>>, vector<1x256xf32>
    %40 = vector.broadcast %39 : vector<1x256xf32> to vector<8x256xf32>
    %41 = arith.addf %38, %40 : vector<8x256xf32>
    %cst_18 = arith.constant 0.000000e+00 : f32
    %42 = vector.broadcast %cst_18 : f32 to vector<8x256xf32>
    %43 = arith.maximumf %41, %42 : vector<8x256xf32>
    %c0_19 = arith.constant 0 : index
    %c0_20 = arith.constant 0 : index
    %44 = vector.load %arg8[%c0_19, %c0_20] : memref<256x128xf32, #tpu.memory_space<vmem>>, vector<256x128xf32>
    %cst_21 = arith.constant dense<0.000000e+00> : vector<8x128xf32>
    %45 = tpu.matmul %43, %44, %cst_21 {dimension_numbers = #tpu.dot_dimension_numbers<[1], [0], [0], [1], [0, 0, 1, 1], [], []>} : vector<8x256xf32>, vector<256x128xf32>, vector<8x128xf32> -> vector<8x128xf32>
    %c0_22 = arith.constant 0 : index
    %c0_23 = arith.constant 0 : index
    %46 = vector.load %arg9[%c0_22, %c0_23] : memref<1x128xf32, #tpu.memory_space<vmem>>, vector<1x128xf32>
    %47 = vector.broadcast %46 : vector<1x128xf32> to vector<8x128xf32>
    %48 = arith.addf %45, %47 : vector<8x128xf32>
    %cst_24 = arith.constant 0.000000e+00 : f32
    %49 = vector.broadcast %cst_24 : f32 to vector<8x128xf32>
    %50 = arith.maximumf %48, %49 : vector<8x128xf32>
    %c0_25 = arith.constant 0 : index
    %c0_26 = arith.constant 0 : index
    %51 = vector.load %arg10[%c0_25, %c0_26] : memref<128x3xf32, #tpu.memory_space<vmem>>, vector<128x3xf32>
    %cst_27 = arith.constant dense<0.000000e+00> : vector<8x3xf32>
    %52 = tpu.matmul %50, %51, %cst_27 {dimension_numbers = #tpu.dot_dimension_numbers<[1], [0], [0], [1], [0, 0, 1, 1], [], []>} : vector<8x128xf32>, vector<128x3xf32>, vector<8x3xf32> -> vector<8x3xf32>
    %c0_28 = arith.constant 0 : index
    %c0_29 = arith.constant 0 : index
    %53 = vector.load %arg11[%c0_28, %c0_29] : memref<1x3xf32, #tpu.memory_space<vmem>>, vector<1x3xf32>
    %54 = vector.broadcast %53 : vector<1x3xf32> to vector<8x3xf32>
    %55 = arith.addf %52, %54 : vector<8x3xf32>
    %cst_30 = arith.constant dense<0xFF800000> : vector<8xf32>
    %56 = vector.multi_reduction <maximumf>, %55, %cst_30 [1] : vector<8x3xf32> to vector<8xf32>
    %57 = vector.shape_cast %56 : vector<8xf32> to vector<8x1xf32>
    %58 = vector.broadcast %57 : vector<8x1xf32> to vector<8x3xf32>
    %59 = arith.subf %55, %58 : vector<8x3xf32>
    %60 = math.exp %59 : vector<8x3xf32>
    %cst_31 = arith.constant dense<0.000000e+00> : vector<8xf32>
    %61 = vector.multi_reduction <add>, %60, %cst_31 [1] : vector<8x3xf32> to vector<8xf32>
    %62 = vector.shape_cast %61 : vector<8xf32> to vector<8x1xf32>
    %63 = tpu.reciprocal %62 {approx = true} : vector<8x1xf32> -> vector<8x1xf32>
    %64 = vector.broadcast %63 : vector<8x1xf32> to vector<8x3xf32>
    %65 = arith.mulf %60, %64 : vector<8x3xf32>
    %c0_32 = arith.constant 0 : index
    %c0_33 = arith.constant 0 : index
    %66 = vector.load %arg12[%c0_32, %c0_33] : memref<8x3xf32, #tpu.memory_space<vmem>>, vector<8x3xf32>
    tpu.vector_store %arg12[%c0_32, %c0_33], %65 {strides = array<i32>} : memref<8x3xf32, #tpu.memory_space<vmem>>, vector<8x3xf32>,
    return
  }
  func.func @transform_0(%arg0: i32) -> (i32, i32, i32) {
    %c0_i32 = arith.constant 0 : i32
    %c0_i32_0 = arith.constant 0 : i32
    %c0_i32_1 = arith.constant 0 : i32
    return %arg0, %c0_i32, %c0_i32_0 : i32, i32, i32
  }
  func.func @transform_1(%arg0: i32) -> (i32, i32) {
    %c0_i32 = arith.constant 0 : i32
    %c0_i32_0 = arith.constant 0 : i32
    %c0_i32_1 = arith.constant 0 : i32
    return %c0_i32, %c0_i32_0 : i32, i32
  }
  func.func @transform_2(%arg0: i32) -> (i32, i32) {
    %c0_i32 = arith.constant 0 : i32
    %c0_i32_0 = arith.constant 0 : i32
    %c0_i32_1 = arith.constant 0 : i32
    return %c0_i32, %c0_i32_0 : i32, i32
  }
  func.func @transform_3(%arg0: i32) -> (i32, i32) {
    %c0_i32 = arith.constant 0 : i32
    %c0_i32_0 = arith.constant 0 : i32
    %c0_i32_1 = arith.constant 0 : i32
    return %c0_i32, %c0_i32_0 : i32, i32
  }
  func.func @transform_4(%arg0: i32) -> (i32, i32) {
    %c0_i32 = arith.constant 0 : i32
    %c0_i32_0 = arith.constant 0 : i32
    %c0_i32_1 = arith.constant 0 : i32
    return %c0_i32, %c0_i32_0 : i32, i32
  }
  func.func @transform_5(%arg0: i32) -> (i32, i32) {
    %c0_i32 = arith.constant 0 : i32
    %c0_i32_0 = arith.constant 0 : i32
    %c0_i32_1 = arith.constant 0 : i32
    return %c0_i32, %c0_i32_0 : i32, i32
  }
  func.func @transform_6(%arg0: i32) -> (i32, i32) {
    %c0_i32 = arith.constant 0 : i32
    %c0_i32_0 = arith.constant 0 : i32
    %c0_i32_1 = arith.constant 0 : i32
    return %c0_i32, %c0_i32_0 : i32, i32
  }
  func.func @transform_7(%arg0: i32) -> (i32, i32) {
    %c0_i32 = arith.constant 0 : i32
    %c0_i32_0 = arith.constant 0 : i32
    %c0_i32_1 = arith.constant 0 : i32
    return %c0_i32, %c0_i32_0 : i32, i32
  }
  func.func @transform_8(%arg0: i32) -> (i32, i32) {
    %c0_i32 = arith.constant 0 : i32
    %c0_i32_0 = arith.constant 0 : i32
    %c0_i32_1 = arith.constant 0 : i32
    return %c0_i32, %c0_i32_0 : i32, i32
  }
  func.func @transform_9(%arg0: i32) -> (i32, i32) {
    %c0_i32 = arith.constant 0 : i32
    %c0_i32_0 = arith.constant 0 : i32
    %c0_i32_1 = arith.constant 0 : i32
    return %c0_i32, %c0_i32_0 : i32, i32
  }
  func.func @transform_10(%arg0: i32) -> (i32, i32) {
    %c0_i32 = arith.constant 0 : i32
    %c0_i32_0 = arith.constant 0 : i32
    %c0_i32_1 = arith.constant 0 : i32
    return %c0_i32, %c0_i32_0 : i32, i32
  }
  func.func @transform_11(%arg0: i32) -> (i32, i32) {
    %c0_i32 = arith.constant 0 : i32
    %c0_i32_0 = arith.constant 0 : i32
    return %arg0, %c0_i32 : i32, i32
  }
}

</mosaic_0001>

<llo_original>
// kernel: classifier_forward.1
$region0: #{classifier_forward.1}
  #allocation0 [shape = 'u32[]', space=smem, size = 0x4, offset = 0x4, fixed_abs, tag = 'smem constant byte address 0x4 - core index']
  #allocation1 [shape = 'u32[144,128]{1,0:T(1,128)}', space=vmem, size = 0x12000, scoped, tag = 'internal scratch']
  #allocation2 [shape = 'f32[1,1]{1,0:T(1,128)S(1)}', space=vmem, size = 0x200, scoped, tag = 'scoped memory for classifier_forward.1']
  %s0 = inlined_call_operand.hbm [shape: f32[16,18,9], index: 0, kind: input, shape index: {}]
  %s1 = inlined_call_operand.hbm [shape: f32[9,16], index: 1, kind: input, shape index: {}]
  %s2 = inlined_call_operand.hbm [shape: f32[1,16], index: 2, kind: input, shape index: {}]
  %s3 = inlined_call_operand.hbm [shape: f32[3,16], index: 3, kind: input, shape index: {}]
  %s4 = inlined_call_operand.<no memory space> [shape: f32[1,1], index: 4, kind: input, shape index: {}]
  %s5 = inlined_call_operand.hbm [shape: f32[16,256], index: 5, kind: input, shape index: {}]
  %s6 = inlined_call_operand.hbm [shape: f32[1,256], index: 6, kind: input, shape index: {}]
  %s7 = inlined_call_operand.hbm [shape: f32[256,128], index: 7, kind: input, shape index: {}]
  %s8 = inlined_call_operand.hbm [shape: f32[1,128], index: 8, kind: input, shape index: {}]
  %s9 = inlined_call_operand.hbm [shape: f32[128,3], index: 9, kind: input, shape index: {}]
  %s10 = inlined_call_operand.hbm [shape: f32[1,3], index: 10, kind: input, shape index: {}]
  %s11 = inlined_call_operand.hbm [shape: f32[16,3], index: 11, kind: output, shape index: {}]
  %s12 = sld [smem:[#allocation0]]
  $region117: #{classifier_forward.1} parent=0
    _
  %s14 = ssub.s32 1, %s12
  %s15 = scalar_select 0, %s14, %s12
  %v16 = vstv %s4
  %17 = vst [vmem:[#allocation2] sm:$0x1] %v16
  $region1: #{classifier_forward.1} parent=0
    #allocation3 [shape = 'u8[196608]{0}', space=vmem, size = 0x30000, scoped, tag = 'input window, operand 0']
    #allocation4 [shape = 's32[2]{0}', space=sflag, size = 0x8, scoped, tag = 'scoped memory for classifier_forward.1']
    #allocation5 [shape = 's32[2]{0}', space=sflag, size = 0x8, scoped, tag = 'scoped memory for classifier_forward.1']
    #allocation6 [shape = 'u8[8192]{0}', space=vmem, size = 0x2000, scoped, tag = 'input window, operand 1, single buffered']
    #allocation7 [shape = 's32[1]{0}', space=sflag, size = 0x4, scoped, tag = 'scoped memory for classifier_forward.1']
    #allocation8 [shape = 'u8[512]{0}', space=vmem, size = 0x400, scoped, tag = 'input window, operand 2, single buffered']
    #allocation9 [shape = 'u8[2048]{0}', space=vmem, size = 0x800, scoped, tag = 'input window, operand 3, single buffered']
    #allocation10 [shape = 's32[1]{0}', space=sflag, size = 0x4, scoped, tag = 'scoped memory for classifier_forward.1']
    #allocation11 [shape = 'u8[16384]{0}', space=vmem, size = 0x4000, scoped, tag = 'input window, operand 5, single buffered']
    #allocation12 [shape = 'u8[1024]{0}', space=vmem, size = 0x400, scoped, tag = 'input window, operand 6, single buffered']
    #allocation13 [shape = 's32[1]{0}', space=sflag, size = 0x4, scoped, tag = 'scoped memory for classifier_forward.1']
    #allocation14 [shape = 'u8[131072]{0}', space=vmem, size = 0x20000, scoped, tag = 'input window, operand 7, single buffered']
    #allocation15 [shape = 'u8[512]{0}', space=vmem, size = 0x400, scoped, tag = 'input window, operand 8, single buffered']
    #allocation16 [shape = 's32[1]{0}', space=sflag, size = 0x4, scoped, tag = 'scoped memory for classifier_forward.1']
    #allocation17 [shape = 'u8[65536]{0}', space=vmem, size = 0x10000, scoped, tag = 'input window, operand 9, single buffered']
    #allocation18 [shape = 'u8[512]{0}', space=vmem, size = 0x400, scoped, tag = 'input window, operand 10, single buffered']
    #allocation19 [shape = 's32[1]{0}', space=sflag, size = 0x4, scoped, tag = 'scoped memory for classifier_forward.1']
    #allocation20 [shape = 'u8[8192]{0}', space=vmem, size = 0x2000, scoped, tag = 'output window, operand 0']
    %18 = vsyncpa [#allocation4], 0
    %s19 = scalar_lea.sflag [#allocation4], 1
    %20 = vsyncpa %s19, 0
    %21 = vsyncpa [#allocation7], 0
    %22 = vsyncpa [#allocation10], 0
    %23 = vsyncpa [#allocation13], 0
    %24 = vsyncpa [#allocation16], 0
    %25 = vsyncpa [#allocation19], 0
    %26 = vsyncpa [#allocation5], 0
    %s27 = scalar_lea.sflag [#allocation5], 1
    %28 = vsyncpa %s27, 0
    loop: start=0, step=1, limit=4
    $region2: #{classifier_forward.1} parent=1 // loop_pre_header
      _
    $region3: #{classifier_forward.1} parent=1 // loop_header
      %s30 = sphi 0, %s34
      %p31 = scmp.ge.s32.totalorder %s30, 4
      %s40 = sphi 0, %s42
      %s43 = sphi 0, %s40
      %s44 = sphi 0, %s43
      %s60 = sphi 0, %s44
      %s64 = sphi 0, %s64
      %s66 = sphi 0, %s64
      %s67 = sphi 0, %s66
      %s81 = sphi 0, %s67
      %s85 = sphi 0, %s85
      %s87 = sphi 0, %s85
      %s88 = sphi 0, %s87
      %s102 = sphi 0, %s88
      %s106 = sphi 0, %s106
      %s108 = sphi 0, %s106
      %s109 = sphi 0, %s108
      %s123 = sphi 0, %s109
      %s127 = sphi 0, %s127
      %s129 = sphi 0, %s127
      %s130 = sphi 0, %s129
      %s144 = sphi 0, %s130
      %s148 = sphi 0, %s148
      %s150 = sphi 0, %s148
      %s151 = sphi 0, %s150
      %s165 = sphi 0, %s151
      %s169 = sphi 0, %s169
      %s171 = sphi 0, %s169
      %s172 = sphi 0, %s171
      %s186 = sphi 0, %s172
      %s190 = sphi 0, %s190
      %s192 = sphi 0, %s190
      %s193 = sphi 0, %s192
      %s207 = sphi 0, %s193
      %s211 = sphi 0, %s211
      %s213 = sphi 0, %s211
      %s214 = sphi 0, %s213
      %s228 = sphi 0, %s214
      %s232 = sphi 0, %s232
      %s234 = sphi 0, %s232
      %s235 = sphi 0, %s234
      %s249 = sphi 0, %s235
      %s253 = sphi 0, %s253
      %s255 = sphi 0, %s253
      %s256 = sphi 0, %s255
      %s270 = sphi 0, %s256
      %s276 = sphi 0, %s278
      %s279 = sphi 0, %s276
      %s280 = sphi 0, %s279
      %s296 = sphi 0, %s280
    $region4: #{classifier_forward.1} parent=1 // loop_header_branch
      %33 = sbr.rel (%p31) target = $region8
    $region5: #{classifier_forward.1} parent=1 // loop_body
      %s35 = ssub.s32 %s30, 1
      %s36 = ssub.s32 %s30, 2
      %s37 = sadd.s32 %s30, 1
      %s38 = ssub.s32 %s30, %s37
      %p39 = scmp.eq.s32.totalorder %s38, 0
      %s41 = sadd.s32 %s40, 1
      %s42 = scalar_select %p39, %s40, %s41
      %p45 = pneg %p39
      %p46 = scmp.eq.s32.totalorder %s30, 1
      %p47 = por %p45, %p46
      %p48 = scmp.ne.s32.totalorder %s40, %s43
      %p49 = scmp.eq.s32.totalorder %s30, 0
      %p50 = por %p48, %p49
      %p51 = scmp.ne.s32.totalorder %s40, %s43
      %p52 = scmp.eq.s32.totalorder %s35, 1
      %p53 = por %p51, %p52
      %p54 = scmp.ne.s32.totalorder %s43, %s44
      %p55 = scmp.eq.s32.totalorder %s35, 0
      %p56 = por %p54, %p55
      %p57 = scmp.ne.s32.totalorder %s43, %s44
      %p58 = scmp.eq.s32.totalorder %s36, 1
      %p59 = por %p57, %p58
      %p61 = scmp.ne.s32.totalorder %s44, %s60
      %p62 = scmp.eq.s32.totalorder %s36, 0
      %p63 = por %p61, %p62
      %s65 = sadd.s32 %s64, 1
      %p68 = scmp.eq.s32.totalorder %s30, 1
      %p69 = scmp.ne.s32.totalorder %s64, %s66
      %p70 = scmp.eq.s32.totalorder %s30, 0
      %p71 = por %p69, %p70
      %p72 = scmp.ne.s32.totalorder %s64, %s66
      %p73 = scmp.eq.s32.totalorder %s35, 1
      %p74 = por %p72, %p73
      %p75 = scmp.ne.s32.totalorder %s66, %s67
      %p76 = scmp.eq.s32.totalorder %s35, 0
      %p77 = por %p75, %p76
      %p78 = scmp.ne.s32.totalorder %s66, %s67
      %p79 = scmp.eq.s32.totalorder %s36, 1
      %p80 = por %p78, %p79
      %p82 = scmp.ne.s32.totalorder %s67, %s81
      %p83 = scmp.eq.s32.totalorder %s36, 0
      %p84 = por %p82, %p83
      %s86 = sadd.s32 %s85, 1
      %p89 = scmp.eq.s32.totalorder %s30, 1
      %p90 = scmp.ne.s32.totalorder %s85, %s87
      %p91 = scmp.eq.s32.totalorder %s30, 0
      %p92 = por %p90, %p91
      %p93 = scmp.ne.s32.totalorder %s85, %s87
      %p94 = scmp.eq.s32.totalorder %s35, 1
      %p95 = por %p93, %p94
      %p96 = scmp.ne.s32.totalorder %s87, %s88
      %p97 = scmp.eq.s32.totalorder %s35, 0
      %p98 = por %p96, %p97
      %p99 = scmp.ne.s32.totalorder %s87, %s88
      %p100 = scmp.eq.s32.totalorder %s36, 1
      %p101 = por %p99, %p100
      %p103 = scmp.ne.s32.totalorder %s88, %s102
      %p104 = scmp.eq.s32.totalorder %s36, 0
      %p105 = por %p103, %p104
      %s107 = sadd.s32 %s106, 1
      %p110 = scmp.eq.s32.totalorder %s30, 1
      %p111 = scmp.ne.s32.totalorder %s106, %s108
      %p112 = scmp.eq.s32.totalorder %s30, 0
      %p113 = por %p111, %p112
      %p114 = scmp.ne.s32.totalorder %s106, %s108
      %p115 = scmp.eq.s32.totalorder %s35, 1
      %p116 = por %p114, %p115
      %p117 = scmp.ne.s32.totalorder %s108, %s109
      %p118 = scmp.eq.s32.totalorder %s35, 0
      %p119 = por %p117, %p118
      %p120 = scmp.ne.s32.totalorder %s108, %s109
      %p121 = scmp.eq.s32.totalorder %s36, 1
      %p122 = por %p120, %p121
      %p124 = scmp.ne.s32.totalorder %s109, %s123
      %p125 = scmp.eq.s32.totalorder %s36, 0
      %p126 = por %p124, %p125
      %s128 = sadd.s32 %s127, 1
      %p131 = scmp.eq.s32.totalorder %s30, 1
      %p132 = scmp.ne.s32.totalorder %s127, %s129
      %p133 = scmp.eq.s32.totalorder %s30, 0
      %p134 = por %p132, %p133
      %p135 = scmp.ne.s32.totalorder %s127, %s129
      %p136 = scmp.eq.s32.totalorder %s35, 1
      %p137 = por %p135, %p136
      %p138 = scmp.ne.s32.totalorder %s129, %s130
      %p139 = scmp.eq.s32.totalorder %s35, 0
      %p140 = por %p138, %p139
      %p141 = scmp.ne.s32.totalorder %s129, %s130
      %p142 = scmp.eq.s32.totalorder %s36, 1
      %p143 = por %p141, %p142
      %p145 = scmp.ne.s32.totalorder %s130, %s144
      %p146 = scmp.eq.s32.totalorder %s36, 0
      %p147 = por %p145, %p146
      %s149 = sadd.s32 %s148, 1
      %p152 = scmp.eq.s32.totalorder %s30, 1
      %p153 = scmp.ne.s32.totalorder %s148, %s150
      %p154 = scmp.eq.s32.totalorder %s30, 0
      %p155 = por %p153, %p154
      %p156 = scmp.ne.s32.totalorder %s148, %s150
      %p157 = scmp.eq.s32.totalorder %s35, 1
      %p158 = por %p156, %p157
      %p159 = scmp.ne.s32.totalorder %s150, %s151
      %p160 = scmp.eq.s32.totalorder %s35, 0
      %p161 = por %p159, %p160
      %p162 = scmp.ne.s32.totalorder %s150, %s151
      %p163 = scmp.eq.s32.totalorder %s36, 1
      %p164 = por %p162, %p163
      %p166 = scmp.ne.s32.totalorder %s151, %s165
      %p167 = scmp.eq.s32.totalorder %s36, 0
      %p168 = por %p166, %p167
      %s170 = sadd.s32 %s169, 1
      %p173 = scmp.eq.s32.totalorder %s30, 1
      %p174 = scmp.ne.s32.totalorder %s169, %s171
      %p175 = scmp.eq.s32.totalorder %s30, 0
      %p176 = por %p174, %p175
      %p177 = scmp.ne.s32.totalorder %s169, %s171
      %p178 = scmp.eq.s32.totalorder %s35, 1
      %p179 = por %p177, %p178
      %p180 = scmp.ne.s32.totalorder %s171, %s172
      %p181 = scmp.eq.s32.totalorder %s35, 0
      %p182 = por %p180, %p181
      %p183 = scmp.ne.s32.totalorder %s171, %s172
      %p184 = scmp.eq.s32.totalorder %s36, 1
      %p185 = por %p183, %p184
      %p187 = scmp.ne.s32.totalorder %s172, %s186
      %p188 = scmp.eq.s32.totalorder %s36, 0
      %p189 = por %p187, %p188
      %s191 = sadd.s32 %s190, 1
      %p194 = scmp.eq.s32.totalorder %s30, 1
      %p195 = scmp.ne.s32.totalorder %s190, %s192
      %p196 = scmp.eq.s32.totalorder %s30, 0
      %p197 = por %p195, %p196
      %p198 = scmp.ne.s32.totalorder %s190, %s192
      %p199 = scmp.eq.s32.totalorder %s35, 1
      %p200 = por %p198, %p199
      %p201 = scmp.ne.s32.totalorder %s192, %s193
      %p202 = scmp.eq.s32.totalorder %s35, 0
      %p203 = por %p201, %p202
      %p204 = scmp.ne.s32.totalorder %s192, %s193
      %p205 = scmp.eq.s32.totalorder %s36, 1
      %p206 = por %p204, %p205
      %p208 = scmp.ne.s32.totalorder %s193, %s207
      %p209 = scmp.eq.s32.totalorder %s36, 0
      %p210 = por %p208, %p209
      %s212 = sadd.s32 %s211, 1
      %p215 = scmp.eq.s32.totalorder %s30, 1
      %p216 = scmp.ne.s32.totalorder %s211, %s213
      %p217 = scmp.eq.s32.totalorder %s30, 0
      %p218 = por %p216, %p217
      %p219 = scmp.ne.s32.totalorder %s211, %s213
      %p220 = scmp.eq.s32.totalorder %s35, 1
      %p221 = por %p219, %p220
      %p222 = scmp.ne.s32.totalorder %s213, %s214
      %p223 = scmp.eq.s32.totalorder %s35, 0
      %p224 = por %p222, %p223
      %p225 = scmp.ne.s32.totalorder %s213, %s214
      %p226 = scmp.eq.s32.totalorder %s36, 1
      %p227 = por %p225, %p226
      %p229 = scmp.ne.s32.totalorder %s214, %s228
      %p230 = scmp.eq.s32.totalorder %s36, 0
      %p231 = por %p229, %p230
      %s233 = sadd.s32 %s232, 1
      %p236 = scmp.eq.s32.totalorder %s30, 1
      %p237 = scmp.ne.s32.totalorder %s232, %s234
      %p238 = scmp.eq.s32.totalorder %s30, 0
      %p239 = por %p237, %p238
      %p240 = scmp.ne.s32.totalorder %s232, %s234
      %p241 = scmp.eq.s32.totalorder %s35, 1
      %p242 = por %p240, %p241
      %p243 = scmp.ne.s32.totalorder %s234, %s235
      %p244 = scmp.eq.s32.totalorder %s35, 0
      %p245 = por %p243, %p244
      %p246 = scmp.ne.s32.totalorder %s234, %s235
      %p247 = scmp.eq.s32.totalorder %s36, 1
      %p248 = por %p246, %p247
      %p250 = scmp.ne.s32.totalorder %s235, %s249
      %p251 = scmp.eq.s32.totalorder %s36, 0
      %p252 = por %p250, %p251
      %s254 = sadd.s32 %s253, 1
      %p257 = scmp.eq.s32.totalorder %s30, 1
      %p258 = scmp.ne.s32.totalorder %s253, %s255
      %p259 = scmp.eq.s32.totalorder %s30, 0
      %p260 = por %p258, %p259
      %p261 = scmp.ne.s32.totalorder %s253, %s255
      %p262 = scmp.eq.s32.totalorder %s35, 1
      %p263 = por %p261, %p262
      %p264 = scmp.ne.s32.totalorder %s255, %s256
      %p265 = scmp.eq.s32.totalorder %s35, 0
      %p266 = por %p264, %p265
      %p267 = scmp.ne.s32.totalorder %s255, %s256
      %p268 = scmp.eq.s32.totalorder %s36, 1
      %p269 = por %p267, %p268
      %p271 = scmp.ne.s32.totalorder %s256, %s270
      %p272 = scmp.eq.s32.totalorder %s36, 0
      %p273 = por %p271, %p272
      %s274 = ssub.s32 %s30, %s37
      %p275 = scmp.eq.s32.totalorder %s274, 0
      %s277 = sadd.s32 %s276, 1
      %s278 = scalar_select %p275, %s276, %s277
      %p281 = pneg %p275
      %p282 = scmp.eq.s32.totalorder %s30, 1
      %p283 = por %p281, %p282
      %p284 = scmp.ne.s32.totalorder %s276, %s279
      %p285 = scmp.eq.s32.totalorder %s30, 0
      %p286 = por %p284, %p285
      %p287 = scmp.ne.s32.totalorder %s276, %s279
      %p288 = scmp.eq.s32.totalorder %s35, 1
      %p289 = por %p287, %p288
      %p290 = scmp.ne.s32.totalorder %s279, %s280
      %p291 = scmp.eq.s32.totalorder %s35, 0
      %p292 = por %p290, %p291
      %p293 = scmp.ne.s32.totalorder %s279, %s280
      %p294 = scmp.eq.s32.totalorder %s36, 1
      %p295 = por %p293, %p294
      %p297 = scmp.ne.s32.totalorder %s280, %s296
      %p298 = scmp.eq.s32.totalorder %s36, 0
      %p299 = por %p297, %p298
      %p300 = scmp.le.s32.totalorder 1, %s30
      %p301 = scmp.lt.s32.totalorder %s30, 3
      %p302 = pnand %p300, %p301
      %p303 = pneg %p302
      // Predicated region
      $region9: #{classifier_forward.1} parent=5 // pred_check
        _
      $region10: #{classifier_forward.1} parent=5 // pred_check_branch
        %305 = sbr.rel (%p302) target = $region12
      $region11: #{classifier_forward.1} parent=5 // pred_region
        %s306 = ssub.s32 %s30, 1
        // Predicated region
        $region13: #{classifier_forward.1} parent=11 // pred_check
          %p307 = pneg %p77
        $region14: #{classifier_forward.1} parent=11 // pred_check_branch
          %309 = sbr.rel (%p307) target = $region16
        $region15: #{classifier_forward.1} parent=11 // pred_region
          %s311 = ssub.s32 256, 256
          %312 = vsyncadd [#allocation7], %s311
          %s313 = sshll.u32 [#allocation6], 4
          %s314 = int_to_ptr.vmem [resolvable:$true] %s313
          %319 = dma.hbm_to_vmem [thread:$0]  %s1, 256, %s314, [#allocation7], 128, 128, 8
        $region16: #{classifier_forward.1} parent=11 // pred_fallthru
          _
        // Predicated region
        $region17: #{classifier_forward.1} parent=11 // pred_check
          %p320 = pneg %p98
        $region18: #{classifier_forward.1} parent=11 // pred_check_branch
          %322 = sbr.rel (%p320) target = $region20
        $region19: #{classifier_forward.1} parent=11 // pred_region
          %s324 = ssub.s32 16, 16
          %325 = vsyncadd [#allocation7], %s324
          %s327 = sshll.u32 [#allocation8], 4
          %s328 = int_to_ptr.vmem [resolvable:$true] %s327
          %330 = dma.hbm_to_vmem [thread:$0]  %s2, 16, %s328, [#allocation7]
        $region20: #{classifier_forward.1} parent=11 // pred_fallthru
          _
        // Predicated region
        $region21: #{classifier_forward.1} parent=11 // pred_check
          %p331 = pneg %p119
        $region22: #{classifier_forward.1} parent=11 // pred_check_branch
          %333 = sbr.rel (%p331) target = $region24
        $region23: #{classifier_forward.1} parent=11 // pred_region
          %s335 = ssub.s32 64, 64
          %336 = vsyncadd [#allocation10], %s335
          %s338 = sshll.u32 [#allocation9], 4
          %s339 = int_to_ptr.vmem [resolvable:$true] %s338
          %341 = dma.hbm_to_vmem [thread:$0]  %s3, 64, %s339, [#allocation10]
        $region24: #{classifier_forward.1} parent=11 // pred_fallthru
          _
        // Predicated region
        $region25: #{classifier_forward.1} parent=11 // pred_check
          %p342 = pneg %p140
        $region26: #{classifier_forward.1} parent=11 // pred_check_branch
          %344 = sbr.rel (%p342) target = $region28
        $region27: #{classifier_forward.1} parent=11 // pred_region
          _
        $region28: #{classifier_forward.1} parent=11 // pred_fallthru
          _
        // Predicated region
        $region29: #{classifier_forward.1} parent=11 // pred_check
          %p345 = pneg %p161
        $region30: #{classifier_forward.1} parent=11 // pred_check_branch
          %347 = sbr.rel (%p345) target = $region32
        $region31: #{classifier_forward.1} parent=11 // pred_region
          %s349 = ssub.s32 512, 512
          %350 = vsyncadd [#allocation10], %s349
          %s351 = sshll.u32 [#allocation11], 4
          %s352 = int_to_ptr.vmem [resolvable:$true] %s351
          %357 = dma.hbm_to_vmem [thread:$0]  %s5, 512, %s352, [#allocation10], 256, 256, 16
        $region32: #{classifier_forward.1} parent=11 // pred_fallthru
          _
        // Predicated region
        $region33: #{classifier_forward.1} parent=11 // pred_check
          %p358 = pneg %p182
        $region34: #{classifier_forward.1} parent=11 // pred_check_branch
          %360 = sbr.rel (%p358) target = $region36
        $region35: #{classifier_forward.1} parent=11 // pred_region
          %s362 = ssub.s32 32, 32
          %363 = vsyncadd [#allocation13], %s362
          %s365 = sshll.u32 [#allocation12], 4
          %s366 = int_to_ptr.vmem [resolvable:$true] %s365
          %368 = dma.hbm_to_vmem [thread:$0]  %s6, 32, %s366, [#allocation13]
        $region36: #{classifier_forward.1} parent=11 // pred_fallthru
          _
        // Predicated region
        $region37: #{classifier_forward.1} parent=11 // pred_check
          %p369 = pneg %p203
        $region38: #{classifier_forward.1} parent=11 // pred_check_branch
          %371 = sbr.rel (%p369) target = $region40
        $region39: #{classifier_forward.1} parent=11 // pred_region
          %s373 = ssub.s32 4096, 4096
          %374 = vsyncadd [#allocation13], %s373
          %s375 = sshll.u32 [#allocation14], 4
          %s376 = int_to_ptr.vmem [resolvable:$true] %s375
          %381 = dma.hbm_to_vmem [thread:$0]  %s7, 4096, %s376, [#allocation13], 128, 128, 8
        $region40: #{classifier_forward.1} parent=11 // pred_fallthru
          _
        // Predicated region
        $region41: #{classifier_forward.1} parent=11 // pred_check
          %p382 = pneg %p224
        $region42: #{classifier_forward.1} parent=11 // pred_check_branch
          %384 = sbr.rel (%p382) target = $region44
        $region43: #{classifier_forward.1} parent=11 // pred_region
          %s386 = ssub.s32 16, 16
          %387 = vsyncadd [#allocation16], %s386
          %s389 = sshll.u32 [#allocation15], 4
          %s390 = int_to_ptr.vmem [resolvable:$true] %s389
          %392 = dma.hbm_to_vmem [thread:$0]  %s8, 16, %s390, [#allocation16]
        $region44: #{classifier_forward.1} parent=11 // pred_fallthru
          _
        // Predicated region
        $region45: #{classifier_forward.1} parent=11 // pred_check
          %p393 = pneg %p245
        $region46: #{classifier_forward.1} parent=11 // pred_check_branch
          %395 = sbr.rel (%p393) target = $region48
        $region47: #{classifier_forward.1} parent=11 // pred_region
          %s397 = ssub.s32 2048, 2048
          %398 = vsyncadd [#allocation16], %s397
          %s399 = sshll.u32 [#allocation17], 4
          %s400 = int_to_ptr.vmem [resolvable:$true] %s399
          %405 = dma.hbm_to_vmem [thread:$0]  %s9, 2048, %s400, [#allocation16], 128, 128, 8
        $region48: #{classifier_forward.1} parent=11 // pred_fallthru
          _
        // Predicated region
        $region49: #{classifier_forward.1} parent=11 // pred_check
          %p406 = pneg %p266
        $region50: #{classifier_forward.1} parent=11 // pred_check_branch
          %408 = sbr.rel (%p406) target = $region52
        $region51: #{classifier_forward.1} parent=11 // pred_region
          %s410 = ssub.s32 16, 16
          %411 = vsyncadd [#allocation19], %s410
          %s413 = sshll.u32 [#allocation18], 4
          %s414 = int_to_ptr.vmem [resolvable:$true] %s413
          %416 = dma.hbm_to_vmem [thread:$0]  %s10, 16, %s414, [#allocation19]
        $region52: #{classifier_forward.1} parent=11 // pred_fallthru
          _
      $region12: #{classifier_forward.1} parent=5 // pred_fallthru
        _
      %p417 = scmp.lt.s32.totalorder %s30, 2
      // Predicated region
      $region53: #{classifier_forward.1} parent=5 // pred_check
        %p418 = pneg %p417
      $region54: #{classifier_forward.1} parent=5 // pred_check_branch
        %420 = sbr.rel (%p418) target = $region56
      $region55: #{classifier_forward.1} parent=5 // pred_region
        // Predicated region
        $region57: #{classifier_forward.1} parent=55 // pred_check
          %p421 = pneg %p50
        $region58: #{classifier_forward.1} parent=55 // pred_check_branch
          %423 = sbr.rel (%p421) target = $region60
        $region59: #{classifier_forward.1} parent=55 // pred_region
          %s424 = sand.u32 %s40, 1
          %s425 = scalar_lea.sflag [#allocation4], %s424
          %s426 = sand.u32 %s40, 1
          %s427 = smul.addr %s426, 192
          %s428 = scalar_lea.vmem [#allocation3], %s427
          %s429 = smul.u32 8, %s30
          %s431 = ssub.s32 3072, 3072
          %432 = vsyncadd %s425, %s431
          %s433 = smul.addr %s429, 3
          %s434 = smul.addr %s433, 128
          %s435 = scalar_lea.hbm %s0, %s434
          %s436 = sshll.u32 %s428, 4
          %s437 = int_to_ptr.vmem [resolvable:$true] %s436
          %442 = dma.hbm_to_vmem [thread:$0]  %s435, 3072, %s437, %s425, 128, 128, 8
        $region60: #{classifier_forward.1} parent=55 // pred_fallthru
          _
      $region56: #{classifier_forward.1} parent=5 // pred_fallthru
        _
      %p443 = scmp.le.s32.totalorder 1, %s30
      %p444 = scmp.lt.s32.totalorder %s30, 3
      %p445 = pnand %p443, %p444
      %p446 = pneg %p445
      // Predicated region
      $region61: #{classifier_forward.1} parent=5 // pred_check
        _
      $region62: #{classifier_forward.1} parent=5 // pred_check_branch
        %448 = sbr.rel (%p445) target = $region64
      $region63: #{classifier_forward.1} parent=5 // pred_region
        %s449 = ssub.s32 %s30, 1
        %s450 = sand.u32 %s43, 1
        %s451 = scalar_lea.sflag [#allocation4], %s450
        %s452 = sand.u32 %s43, 1
        %s453 = smul.addr %s452, 192
        %s454 = scalar_lea.vmem [#allocation3], %s453
        // Predicated region
        $region65: #{classifier_forward.1} parent=63 // pred_check
          %p455 = pneg %p56
        $region66: #{classifier_forward.1} parent=63 // pred_check_branch
          %457 = sbr.rel (%p455) target = $region68
        $region67: #{classifier_forward.1} parent=63 // pred_region
          %458 = dma.done %s451, 3072
        $region68: #{classifier_forward.1} parent=63 // pred_fallthru
          _
        // Predicated region
        $region69: #{classifier_forward.1} parent=63 // pred_check
          %p459 = pneg %p77
        $region70: #{classifier_forward.1} parent=63 // pred_check_branch
          %461 = sbr.rel (%p459) target = $region72
        $region71: #{classifier_forward.1} parent=63 // pred_region
          %462 = dma.done [#allocation7], 256
        $region72: #{classifier_forward.1} parent=63 // pred_fallthru
          _
        // Predicated region
        $region73: #{classifier_forward.1} parent=63 // pred_check
          %p463 = pneg %p98
        $region74: #{classifier_forward.1} parent=63 // pred_check_branch
          %465 = sbr.rel (%p463) target = $region76
        $region75: #{classifier_forward.1} parent=63 // pred_region
          %466 = dma.done [#allocation7], 16
        $region76: #{classifier_forward.1} parent=63 // pred_fallthru
          _
        // Predicated region
        $region77: #{classifier_forward.1} parent=63 // pred_check
          %p467 = pneg %p119
        $region78: #{classifier_forward.1} parent=63 // pred_check_branch
          %469 = sbr.rel (%p467) target = $region80
        $region79: #{classifier_forward.1} parent=63 // pred_region
          %470 = dma.done [#allocation10], 64
        $region80: #{classifier_forward.1} parent=63 // pred_fallthru
          _
        // Predicated region
        $region81: #{classifier_forward.1} parent=63 // pred_check
          %p471 = pneg %p161
        $region82: #{classifier_forward.1} parent=63 // pred_check_branch
          %473 = sbr.rel (%p471) target = $region84
        $region83: #{classifier_forward.1} parent=63 // pred_region
          %474 = dma.done [#allocation10], 512
        $region84: #{classifier_forward.1} parent=63 // pred_fallthru
          _
        // Predicated region
        $region85: #{classifier_forward.1} parent=63 // pred_check
          %p475 = pneg %p182
        $region86: #{classifier_forward.1} parent=63 // pred_check_branch
          %477 = sbr.rel (%p475) target = $region88
        $region87: #{classifier_forward.1} parent=63 // pred_region
          %478 = dma.done [#allocation13], 32
        $region88: #{classifier_forward.1} parent=63 // pred_fallthru
          _
        // Predicated region
        $region89: #{classifier_forward.1} parent=63 // pred_check
          %p479 = pneg %p203
        $region90: #{classifier_forward.1} parent=63 // pred_check_branch
          %481 = sbr.rel (%p479) target = $region92
        $region91: #{classifier_forward.1} parent=63 // pred_region
          %482 = dma.done [#allocation13], 4096
        $region92: #{classifier_forward.1} parent=63 // pred_fallthru
          _
        // Predicated region
        $region93: #{classifier_forward.1} parent=63 // pred_check
          %p483 = pneg %p224
        $region94: #{classifier_forward.1} parent=63 // pred_check_branch
          %485 = sbr.rel (%p483) target = $region96
        $region95: #{classifier_forward.1} parent=63 // pred_region
          %486 = dma.done [#allocation16], 16
        $region96: #{classifier_forward.1} parent=63 // pred_fallthru
          _
        // Predicated region
        $region97: #{classifier_forward.1} parent=63 // pred_check
          %p487 = pneg %p245
        $region98: #{classifier_forward.1} parent=63 // pred_check_branch
          %489 = sbr.rel (%p487) target = $region100
        $region99: #{classifier_forward.1} parent=63 // pred_region
          %490 = dma.done [#allocation16], 2048
        $region100: #{classifier_forward.1} parent=63 // pred_fallthru
          _
        // Predicated region
        $region101: #{classifier_forward.1} parent=63 // pred_check
          %p491 = pneg %p266
        $region102: #{classifier_forward.1} parent=63 // pred_check_branch
          %493 = sbr.rel (%p491) target = $region104
        $region103: #{classifier_forward.1} parent=63 // pred_region
          %494 = dma.done [#allocation19], 16
        $region104: #{classifier_forward.1} parent=63 // pred_fallthru
          _
        %s495 = sand.u32 %s43, 1
        %s496 = scalar_lea.sflag [#allocation4], %s495
        %s497 = sand.u32 %s43, 1
        %s498 = smul.addr %s497, 192
        %s499 = scalar_lea.vmem [#allocation3], %s498
        %p500 = pneg %p56
        %p501 = pneg %p53
        %p502 = pneg %p77
        %p503 = pneg %p74
        %p504 = pneg %p98
        %p505 = pneg %p95
        %p506 = pneg %p119
        %p507 = pneg %p116
        %p508 = pneg %p140
        %p509 = pneg %p137
        %p510 = pneg %p161
        %p511 = pneg %p158
        %p512 = pneg %p182
        %p513 = pneg %p179
        %p514 = pneg %p203
        %p515 = pneg %p200
        %p516 = pneg %p224
        %p517 = pneg %p221
        %p518 = pneg %p245
        %p519 = pneg %p242
        %p520 = pneg %p266
        %p521 = pneg %p263
        %p522 = pneg %p292
        %p523 = pneg %p289
        %s524 = sand.u32 %s279, 1
        %s525 = scalar_lea.sflag [#allocation5], %s524
        %s526 = sand.u32 %s279, 1
        %s527 = smul.addr %s526, 8
        %s528 = scalar_lea.vmem [#allocation20], %s527
        %s529 = smul.u32 8, %s35
        %v530 = vld [vmem:[%s454] sm:$0xff]
        %v531 = vld [vmem:[%s454 + $0x8] sm:$0xff]
        %v532 = vld [vmem:[%s454 + $0x10] sm:$0x3]
        %v533 = vld [vmem:[%s454 + $0x18] sm:$0xff]
        %v534 = vld [vmem:[%s454 + $0x20] sm:$0xff]
        %v535 = vld [vmem:[%s454 + $0x28] sm:$0x3]
        %v536 = vld [vmem:[%s454 + $0x30] sm:$0xff]
        %v537 = vld [vmem:[%s454 + $0x38] sm:$0xff]
        %v538 = vld [vmem:[%s454 + $0x40] sm:$0x3]
        %v539 = vld [vmem:[%s454 + $0x48] sm:$0xff]
        %v540 = vld [vmem:[%s454 + $0x50] sm:$0xff]
        %v541 = vld [vmem:[%s454 + $0x58] sm:$0x3]
        %v542 = vld [vmem:[%s454 + $0x60] sm:$0xff]
        %v543 = vld [vmem:[%s454 + $0x68] sm:$0xff]
        %v544 = vld [vmem:[%s454 + $0x70] sm:$0x3]
        %v545 = vld [vmem:[%s454 + $0x78] sm:$0xff]
        %v546 = vld [vmem:[%s454 + $0x80] sm:$0xff]
        %v547 = vld [vmem:[%s454 + $0x88] sm:$0x3]
        %v548 = vld [vmem:[%s454 + $0x90] sm:$0xff]
        %v549 = vld [vmem:[%s454 + $0x98] sm:$0xff]
        %v550 = vld [vmem:[%s454 + $0xa0] sm:$0x3]
        %v551 = vld [vmem:[%s454 + $0xa8] sm:$0xff]
        %v552 = vld [vmem:[%s454 + $0xb0] sm:$0xff]
        %v553 = vld [vmem:[%s454 + $0xb8] sm:$0x3]
        %v578 = vcombine.high %v530, %v530
        %v580 = vunpack.c.l.s4 1983009808
        %v581 = vunpack.c.0.s8 %v580
        %v582 = vlaneseq
        %v583 = vshrl.u32 %v582, 7
        %v584 = vsub.s32 %v581, %v583
        %v585 = vrot.slane %v530, %v584
        %v587 = vunpack.c.l.s4 1983009808
        %v588 = vunpack.c.0.s8 %v587
        %v589 = vlaneseq
        %v590 = vshrl.u32 %v589, 7
        %v591 = vsub.s32 %v588, %v590
        %v592 = vrot.slane %v578, %v591
        %v593 = vcombine.high %v585, %v585
        %v594 = vcombine.high %v592, %v592
        %v595 = vcombine.high %v531, %v531
        %v597 = vunpack.c.l.s4 1983009808
        %v598 = vunpack.c.0.s8 %v597
        %v599 = vlaneseq
        %v600 = vshrl.u32 %v599, 7
        %v601 = vsub.s32 %v598, %v600
        %v602 = vrot.slane %v531, %v601
        %v604 = vunpack.c.l.s4 1983009808
        %v605 = vunpack.c.0.s8 %v604
        %v606 = vlaneseq
        %v607 = vshrl.u32 %v606, 7
        %v608 = vsub.s32 %v605, %v607
        %v609 = vrot.slane %v595, %v608
        %v610 = vcombine.high %v602, %v602
        %v611 = vcombine.high %v609, %v609
        %v613 = vunpack.c.l.s4 1983009808
        %v614 = vunpack.c.0.s8 %v613
        %v615 = vlaneseq
        %v616 = vshrl.u32 %v615, 7
        %v617 = vsub.s32 %v614, %v616
        %v618 = vrot.slane %v532, %v617
        %v619 = vcombine.high %v533, %v533
        %v621 = vunpack.c.l.s4 1983009808
        %v622 = vunpack.c.0.s8 %v621
        %v623 = vlaneseq
        %v624 = vshrl.u32 %v623, 7
        %v625 = vsub.s32 %v622, %v624
        %v626 = vrot.slane %v533, %v625
        %v628 = vunpack.c.l.s4 1983009808
        %v629 = vunpack.c.0.s8 %v628
        %v630 = vlaneseq
        %v631 = vshrl.u32 %v630, 7
        %v632 = vsub.s32 %v629, %v631
        %v633 = vrot.slane %v619, %v632
        %v634 = vcombine.high %v626, %v626
        %v635 = vcombine.high %v633, %v633
        %v636 = vcombine.high %v534, %v534
        %v638 = vunpack.c.l.s4 1983009808
        %v639 = vunpack.c.0.s8 %v638
        %v640 = vlaneseq
        %v641 = vshrl.u32 %v640, 7
        %v642 = vsub.s32 %v639, %v641
        %v643 = vrot.slane %v534, %v642
        %v645 = vunpack.c.l.s4 1983009808
        %v646 = vunpack.c.0.s8 %v645
        %v647 = vlaneseq
        %v648 = vshrl.u32 %v647, 7
        %v649 = vsub.s32 %v646, %v648
        %v650 = vrot.slane %v636, %v649
        %v651 = vcombine.high %v643, %v643
        %v652 = vcombine.high %v650, %v650
        %v654 = vunpack.c.l.s4 1983009808
        %v655 = vunpack.c.0.s8 %v654
        %v656 = vlaneseq
        %v657 = vshrl.u32 %v656, 7
        %v658 = vsub.s32 %v655, %v657
        %v659 = vrot.slane %v535, %v658
        %v660 = vcombine.high %v536, %v536
        %v662 = vunpack.c.l.s4 1983009808
        %v663 = vunpack.c.0.s8 %v662
        %v664 = vlaneseq
        %v665 = vshrl.u32 %v664, 7
        %v666 = vsub.s32 %v663, %v665
        %v667 = vrot.slane %v536, %v666
        %v669 = vunpack.c.l.s4 1983009808
        %v670 = vunpack.c.0.s8 %v669
        %v671 = vlaneseq
        %v672 = vshrl.u32 %v671, 7
        %v673 = vsub.s32 %v670, %v672
        %v674 = vrot.slane %v660, %v673
        %v675 = vcombine.high %v667, %v667
        %v676 = vcombine.high %v674, %v674
        %v677 = vcombine.high %v537, %v537
        %v679 = vunpack.c.l.s4 1983009808
        %v680 = vunpack.c.0.s8 %v679
        %v681 = vlaneseq
        %v682 = vshrl.u32 %v681, 7
        %v683 = vsub.s32 %v680, %v682
        %v684 = vrot.slane %v537, %v683
        %v686 = vunpack.c.l.s4 1983009808
        %v687 = vunpack.c.0.s8 %v686
        %v688 = vlaneseq
        %v689 = vshrl.u32 %v688, 7
        %v690 = vsub.s32 %v687, %v689
        %v691 = vrot.slane %v677, %v690
        %v692 = vcombine.high %v684, %v684
        %v693 = vcombine.high %v691, %v691
        %v695 = vunpack.c.l.s4 1983009808
        %v696 = vunpack.c.0.s8 %v695
        %v697 = vlaneseq
        %v698 = vshrl.u32 %v697, 7
        %v699 = vsub.s32 %v696, %v698
        %v700 = vrot.slane %v538, %v699
        %v701 = vcombine.high %v539, %v539
        %v703 = vunpack.c.l.s4 1983009808
        %v704 = vunpack.c.0.s8 %v703
        %v705 = vlaneseq
        %v706 = vshrl.u32 %v705, 7
        %v707 = vsub.s32 %v704, %v706
        %v708 = vrot.slane %v539, %v707
        %v710 = vunpack.c.l.s4 1983009808
        %v711 = vunpack.c.0.s8 %v710
        %v712 = vlaneseq
        %v713 = vshrl.u32 %v712, 7
        %v714 = vsub.s32 %v711, %v713
        %v715 = vrot.slane %v701, %v714
        %v716 = vcombine.high %v708, %v708
        %v717 = vcombine.high %v715, %v715
        %v718 = vcombine.high %v540, %v540
        %v720 = vunpack.c.l.s4 1983009808
        %v721 = vunpack.c.0.s8 %v720
        %v722 = vlaneseq
        %v723 = vshrl.u32 %v722, 7
        %v724 = vsub.s32 %v721, %v723
        %v725 = vrot.slane %v540, %v724
        %v727 = vunpack.c.l.s4 1983009808
        %v728 = vunpack.c.0.s8 %v727
        %v729 = vlaneseq
        %v730 = vshrl.u32 %v729, 7
        %v731 = vsub.s32 %v728, %v730
        %v732 = vrot.slane %v718, %v731
        %v733 = vcombine.high %v725, %v725
        %v734 = vcombine.high %v732, %v732
        %v736 = vunpack.c.l.s4 1983009808
        %v737 = vunpack.c.0.s8 %v736
        %v738 = vlaneseq
        %v739 = vshrl.u32 %v738, 7
        %v740 = vsub.s32 %v737, %v739
        %v741 = vrot.slane %v541, %v740
        %v742 = vcombine.high %v542, %v542
        %v744 = vunpack.c.l.s4 1983009808
        %v745 = vunpack.c.0.s8 %v744
        %v746 = vlaneseq
        %v747 = vshrl.u32 %v746, 7
        %v748 = vsub.s32 %v745, %v747
        %v749 = vrot.slane %v542, %v748
        %v751 = vunpack.c.l.s4 1983009808
        %v752 = vunpack.c.0.s8 %v751
        %v753 = vlaneseq
        %v754 = vshrl.u32 %v753, 7
        %v755 = vsub.s32 %v752, %v754
        %v756 = vrot.slane %v742, %v755
        %v757 = vcombine.high %v749, %v749
        %v758 = vcombine.high %v756, %v756
        %v759 = vcombine.high %v543, %v543
        %v761 = vunpack.c.l.s4 1983009808
        %v762 = vunpack.c.0.s8 %v761
        %v763 = vlaneseq
        %v764 = vshrl.u32 %v763, 7
        %v765 = vsub.s32 %v762, %v764
        %v766 = vrot.slane %v543, %v765
        %v768 = vunpack.c.l.s4 1983009808
        %v769 = vunpack.c.0.s8 %v768
        %v770 = vlaneseq
        %v771 = vshrl.u32 %v770, 7
        %v772 = vsub.s32 %v769, %v771
        %v773 = vrot.slane %v759, %v772
        %v774 = vcombine.high %v766, %v766
        %v775 = vcombine.high %v773, %v773
        %v777 = vunpack.c.l.s4 1983009808
        %v778 = vunpack.c.0.s8 %v777
        %v779 = vlaneseq
        %v780 = vshrl.u32 %v779, 7
        %v781 = vsub.s32 %v778, %v780
        %v782 = vrot.slane %v544, %v781
        %v783 = vcombine.high %v545, %v545
        %v785 = vunpack.c.l.s4 1983009808
        %v786 = vunpack.c.0.s8 %v785
        %v787 = vlaneseq
        %v788 = vshrl.u32 %v787, 7
        %v789 = vsub.s32 %v786, %v788
        %v790 = vrot.slane %v545, %v789
        %v792 = vunpack.c.l.s4 1983009808
        %v793 = vunpack.c.0.s8 %v792
        %v794 = vlaneseq
        %v795 = vshrl.u32 %v794, 7
        %v796 = vsub.s32 %v793, %v795
        %v797 = vrot.slane %v783, %v796
        %v798 = vcombine.high %v790, %v790
        %v799 = vcombine.high %v797, %v797
        %v800 = vcombine.high %v546, %v546
        %v802 = vunpack.c.l.s4 1983009808
        %v803 = vunpack.c.0.s8 %v802
        %v804 = vlaneseq
        %v805 = vshrl.u32 %v804, 7
        %v806 = vsub.s32 %v803, %v805
        %v807 = vrot.slane %v546, %v806
        %v809 = vunpack.c.l.s4 1983009808
        %v810 = vunpack.c.0.s8 %v809
        %v811 = vlaneseq
        %v812 = vshrl.u32 %v811, 7
        %v813 = vsub.s32 %v810, %v812
        %v814 = vrot.slane %v800, %v813
        %v815 = vcombine.high %v807, %v807
        %v816 = vcombine.high %v814, %v814
        %v818 = vunpack.c.l.s4 1983009808
        %v819 = vunpack.c.0.s8 %v818
        %v820 = vlaneseq
        %v821 = vshrl.u32 %v820, 7
        %v822 = vsub.s32 %v819, %v821
        %v823 = vrot.slane %v547, %v822
        %v824 = vcombine.high %v548, %v548
        %v826 = vunpack.c.l.s4 1983009808
        %v827 = vunpack.c.0.s8 %v826
        %v828 = vlaneseq
        %v829 = vshrl.u32 %v828, 7
        %v830 = vsub.s32 %v827, %v829
        %v831 = vrot.slane %v548, %v830
        %v833 = vunpack.c.l.s4 1983009808
        %v834 = vunpack.c.0.s8 %v833
        %v835 = vlaneseq
        %v836 = vshrl.u32 %v835, 7
        %v837 = vsub.s32 %v834, %v836
        %v838 = vrot.slane %v824, %v837
        %v839 = vcombine.high %v831, %v831
        %v840 = vcombine.high %v838, %v838
        %v841 = vcombine.high %v549, %v549
        %v843 = vunpack.c.l.s4 1983009808
        %v844 = vunpack.c.0.s8 %v843
        %v845 = vlaneseq
        %v846 = vshrl.u32 %v845, 7
        %v847 = vsub.s32 %v844, %v846
        %v848 = vrot.slane %v549, %v847
        %v850 = vunpack.c.l.s4 1983009808
        %v851 = vunpack.c.0.s8 %v850
        %v852 = vlaneseq
        %v853 = vshrl.u32 %v852, 7
        %v854 = vsub.s32 %v851, %v853
        %v855 = vrot.slane %v841, %v854
        %v856 = vcombine.high %v848, %v848
        %v857 = vcombine.high %v855, %v855
        %v859 = vunpack.c.l.s4 1983009808
        %v860 = vunpack.c.0.s8 %v859
        %v861 = vlaneseq
        %v862 = vshrl.u32 %v861, 7
        %v863 = vsub.s32 %v860, %v862
        %v864 = vrot.slane %v550, %v863
        %v865 = vcombine.high %v551, %v551
        %v867 = vunpack.c.l.s4 1983009808
        %v868 = vunpack.c.0.s8 %v867
        %v869 = vlaneseq
        %v870 = vshrl.u32 %v869, 7
        %v871 = vsub.s32 %v868, %v870
        %v872 = vrot.slane %v551, %v871
        %v874 = vunpack.c.l.s4 1983009808
        %v875 = vunpack.c.0.s8 %v874
        %v876 = vlaneseq
        %v877 = vshrl.u32 %v876, 7
        %v878 = vsub.s32 %v875, %v877
        %v879 = vrot.slane %v865, %v878
        %v880 = vcombine.high %v872, %v872
        %v881 = vcombine.high %v879, %v879
        %v882 = vcombine.high %v552, %v552
        %v884 = vunpack.c.l.s4 1983009808
        %v885 = vunpack.c.0.s8 %v884
        %v886 = vlaneseq
        %v887 = vshrl.u32 %v886, 7
        %v888 = vsub.s32 %v885, %v887
        %v889 = vrot.slane %v552, %v888
        %v891 = vunpack.c.l.s4 1983009808
        %v892 = vunpack.c.0.s8 %v891
        %v893 = vlaneseq
        %v894 = vshrl.u32 %v893, 7
        %v895 = vsub.s32 %v892, %v894
        %v896 = vrot.slane %v882, %v895
        %v897 = vcombine.high %v889, %v889
        %v898 = vcombine.high %v896, %v896
        %v900 = vunpack.c.l.s4 1983009808
        %v901 = vunpack.c.0.s8 %v900
        %v902 = vlaneseq
        %v903 = vshrl.u32 %v902, 7
        %v904 = vsub.s32 %v901, %v903
        %v905 = vrot.slane %v553, %v904
        %v906 = vld [vmem:[#allocation6] sm:$0xff]
        %v907 = vld [vmem:[#allocation6 + $0x8] sm:$0x1]
        %v908 = vld [vmem:[#allocation8] sm:$0x1]
        %v910 = vlaneseq
        %v911 = vshrl.u32 %v910, 7
        %v912 = vsub.s32 0, %v911
        %v913 = vrot.slane %v908, %v912
        %v915 = vcombine.low %v585, %v593
        %v916 = vcombine.low %v592, %v594
        %v918 = vunpack.c.l.s4 1983009808
        %v919 = vunpack.c.0.s8 %v918
        %v920 = vlaneseq
        %v921 = vshrl.u32 %v920, 7
        %v922 = vsub.s32 %v919, %v921
        %v923 = vrot.slane %v915, %v922
        %v925 = vunpack.c.l.s4 1983009808
        %v926 = vunpack.c.0.s8 %v925
        %v927 = vlaneseq
        %v928 = vshrl.u32 %v927, 7
        %v929 = vsub.s32 %v926, %v928
        %v930 = vrot.slane %v916, %v929
        %v931 = vcombine.low %v923, %v930
        %v932 = vcombine.low %v602, %v610
        %v933 = vcombine.low %v609, %v611
        %v935 = vunpack.c.l.s4 1983009808
        %v936 = vunpack.c.0.s8 %v935
        %v937 = vlaneseq
        %v938 = vshrl.u32 %v937, 7
        %v939 = vsub.s32 %v936, %v938
        %v940 = vrot.slane %v932, %v939
        %v942 = vunpack.c.l.s4 1983009808
        %v943 = vunpack.c.0.s8 %v942
        %v944 = vlaneseq
        %v945 = vshrl.u32 %v944, 7
        %v946 = vsub.s32 %v943, %v945
        %v947 = vrot.slane %v933, %v946
        %v948 = vcombine.low %v940, %v947
        %v949 = vcombine.low %v618, %v626
        %v950 = vcombine.low %v634, %v633
        %v952 = vunpack.c.l.s4 1983009808
        %v953 = vunpack.c.0.s8 %v952
        %v954 = vlaneseq
        %v955 = vshrl.u32 %v954, 7
        %v956 = vsub.s32 %v953, %v955
        %v957 = vrot.slane %v949, %v956
        %v959 = vunpack.c.l.s4 1983009808
        %v960 = vunpack.c.0.s8 %v959
        %v961 = vlaneseq
        %v962 = vshrl.u32 %v961, 7
        %v963 = vsub.s32 %v960, %v962
        %v964 = vrot.slane %v950, %v963
        %v965 = vcombine.low %v957, %v964
        %v966 = vcombine.low %v635, %v643
        %v967 = vcombine.low %v651, %v650
        %v969 = vunpack.c.l.s4 1983009808
        %v970 = vunpack.c.0.s8 %v969
        %v971 = vlaneseq
        %v972 = vshrl.u32 %v971, 7
        %v973 = vsub.s32 %v970, %v972
        %v974 = vrot.slane %v966, %v973
        %v976 = vunpack.c.l.s4 1983009808
        %v977 = vunpack.c.0.s8 %v976
        %v978 = vlaneseq
        %v979 = vshrl.u32 %v978, 7
        %v980 = vsub.s32 %v977, %v979
        %v981 = vrot.slane %v967, %v980
        %v982 = vcombine.low %v974, %v981
        %v983 = vcombine.low %v652, %v659
        %v984 = vcombine.low %v667, %v675
        %v986 = vunpack.c.l.s4 1983009808
        %v987 = vunpack.c.0.s8 %v986
        %v988 = vlaneseq
        %v989 = vshrl.u32 %v988, 7
        %v990 = vsub.s32 %v987, %v989
        %v991 = vrot.slane %v983, %v990
        %v993 = vunpack.c.l.s4 1983009808
        %v994 = vunpack.c.0.s8 %v993
        %v995 = vlaneseq
        %v996 = vshrl.u32 %v995, 7
        %v997 = vsub.s32 %v994, %v996
        %v998 = vrot.slane %v984, %v997
        %v999 = vcombine.low %v991, %v998
        %v1000 = vcombine.low %v674, %v676
        %v1001 = vcombine.low %v684, %v692
        %v1003 = vunpack.c.l.s4 1983009808
        %v1004 = vunpack.c.0.s8 %v1003
        %v1005 = vlaneseq
        %v1006 = vshrl.u32 %v1005, 7
        %v1007 = vsub.s32 %v1004, %v1006
        %v1008 = vrot.slane %v1000, %v1007
        %v1010 = vunpack.c.l.s4 1983009808
        %v1011 = vunpack.c.0.s8 %v1010
        %v1012 = vlaneseq
        %v1013 = vshrl.u32 %v1012, 7
        %v1014 = vsub.s32 %v1011, %v1013
        %v1015 = vrot.slane %v1001, %v1014
        %v1016 = vcombine.low %v1008, %v1015
        %v1017 = vcombine.low %v691, %v693
        %v1018 = vcombine.low %v700, %v708
        %v1020 = vunpack.c.l.s4 1983009808
        %v1021 = vunpack.c.0.s8 %v1020
        %v1022 = vlaneseq
        %v1023 = vshrl.u32 %v1022, 7
        %v1024 = vsub.s32 %v1021, %v1023
        %v1025 = vrot.slane %v1017, %v1024
        %v1027 = vunpack.c.l.s4 1983009808
        %v1028 = vunpack.c.0.s8 %v1027
        %v1029 = vlaneseq
        %v1030 = vshrl.u32 %v1029, 7
        %v1031 = vsub.s32 %v1028, %v1030
        %v1032 = vrot.slane %v1018, %v1031
        %v1033 = vcombine.low %v1025, %v1032
        %v1034 = vcombine.low %v716, %v715
        %v1035 = vcombine.low %v717, %v725
        %v1037 = vunpack.c.l.s4 1983009808
        %v1038 = vunpack.c.0.s8 %v1037
        %v1039 = vlaneseq
        %v1040 = vshrl.u32 %v1039, 7
        %v1041 = vsub.s32 %v1038, %v1040
        %v1042 = vrot.slane %v1034, %v1041
        %v1044 = vunpack.c.l.s4 1983009808
        %v1045 = vunpack.c.0.s8 %v1044
        %v1046 = vlaneseq
        %v1047 = vshrl.u32 %v1046, 7
        %v1048 = vsub.s32 %v1045, %v1047
        %v1049 = vrot.slane %v1035, %v1048
        %v1050 = vcombine.low %v1042, %v1049
        %v1051 = vcombine.low %v733, %v732
        %v1052 = vcombine.low %v734, %v741
        %v1054 = vunpack.c.l.s4 1983009808
        %v1055 = vunpack.c.0.s8 %v1054
        %v1056 = vlaneseq
        %v1057 = vshrl.u32 %v1056, 7
        %v1058 = vsub.s32 %v1055, %v1057
        %v1059 = vrot.slane %v1051, %v1058
        %v1061 = vunpack.c.l.s4 1983009808
        %v1062 = vunpack.c.0.s8 %v1061
        %v1063 = vlaneseq
        %v1064 = vshrl.u32 %v1063, 7
        %v1065 = vsub.s32 %v1062, %v1064
        %v1066 = vrot.slane %v1052, %v1065
        %v1067 = vcombine.low %v1059, %v1066
        %v1068 = vcombine.low %v749, %v757
        %v1069 = vcombine.low %v756, %v758
        %v1071 = vunpack.c.l.s4 1983009808
        %v1072 = vunpack.c.0.s8 %v1071
        %v1073 = vlaneseq
        %v1074 = vshrl.u32 %v1073, 7
        %v1075 = vsub.s32 %v1072, %v1074
        %v1076 = vrot.slane %v1068, %v1075
        %v1078 = vunpack.c.l.s4 1983009808
        %v1079 = vunpack.c.0.s8 %v1078
        %v1080 = vlaneseq
        %v1081 = vshrl.u32 %v1080, 7
        %v1082 = vsub.s32 %v1079, %v1081
        %v1083 = vrot.slane %v1069, %v1082
        %v1084 = vcombine.low %v1076, %v1083
        %v1085 = vcombine.low %v766, %v774
        %v1086 = vcombine.low %v773, %v775
        %v1088 = vunpack.c.l.s4 1983009808
        %v1089 = vunpack.c.0.s8 %v1088
        %v1090 = vlaneseq
        %v1091 = vshrl.u32 %v1090, 7
        %v1092 = vsub.s32 %v1089, %v1091
        %v1093 = vrot.slane %v1085, %v1092
        %v1095 = vunpack.c.l.s4 1983009808
        %v1096 = vunpack.c.0.s8 %v1095
        %v1097 = vlaneseq
        %v1098 = vshrl.u32 %v1097, 7
        %v1099 = vsub.s32 %v1096, %v1098
        %v1100 = vrot.slane %v1086, %v1099
        %v1101 = vcombine.low %v1093, %v1100
        %v1102 = vcombine.low %v782, %v790
        %v1103 = vcombine.low %v798, %v797
        %v1105 = vunpack.c.l.s4 1983009808
        %v1106 = vunpack.c.0.s8 %v1105
        %v1107 = vlaneseq
        %v1108 = vshrl.u32 %v1107, 7
        %v1109 = vsub.s32 %v1106, %v1108
        %v1110 = vrot.slane %v1102, %v1109
        %v1112 = vunpack.c.l.s4 1983009808
        %v1113 = vunpack.c.0.s8 %v1112
        %v1114 = vlaneseq
        %v1115 = vshrl.u32 %v1114, 7
        %v1116 = vsub.s32 %v1113, %v1115
        %v1117 = vrot.slane %v1103, %v1116
        %v1118 = vcombine.low %v1110, %v1117
        %v1119 = vcombine.low %v799, %v807
        %v1120 = vcombine.low %v815, %v814
        %v1122 = vunpack.c.l.s4 1983009808
        %v1123 = vunpack.c.0.s8 %v1122
        %v1124 = vlaneseq
        %v1125 = vshrl.u32 %v1124, 7
        %v1126 = vsub.s32 %v1123, %v1125
        %v1127 = vrot.slane %v1119, %v1126
        %v1129 = vunpack.c.l.s4 1983009808
        %v1130 = vunpack.c.0.s8 %v1129
        %v1131 = vlaneseq
        %v1132 = vshrl.u32 %v1131, 7
        %v1133 = vsub.s32 %v1130, %v1132
        %v1134 = vrot.slane %v1120, %v1133
        %v1135 = vcombine.low %v1127, %v1134
        %v1136 = vcombine.low %v816, %v823
        %v1137 = vcombine.low %v831, %v839
        %v1139 = vunpack.c.l.s4 1983009808
        %v1140 = vunpack.c.0.s8 %v1139
        %v1141 = vlaneseq
        %v1142 = vshrl.u32 %v1141, 7
        %v1143 = vsub.s32 %v1140, %v1142
        %v1144 = vrot.slane %v1136, %v1143
        %v1146 = vunpack.c.l.s4 1983009808
        %v1147 = vunpack.c.0.s8 %v1146
        %v1148 = vlaneseq
        %v1149 = vshrl.u32 %v1148, 7
        %v1150 = vsub.s32 %v1147, %v1149
        %v1151 = vrot.slane %v1137, %v1150
        %v1152 = vcombine.low %v1144, %v1151
        %v1153 = vcombine.low %v838, %v840
        %v1154 = vcombine.low %v848, %v856
        %v1156 = vunpack.c.l.s4 1983009808
        %v1157 = vunpack.c.0.s8 %v1156
        %v1158 = vlaneseq
        %v1159 = vshrl.u32 %v1158, 7
        %v1160 = vsub.s32 %v1157, %v1159
        %v1161 = vrot.slane %v1153, %v1160
        %v1163 = vunpack.c.l.s4 1983009808
        %v1164 = vunpack.c.0.s8 %v1163
        %v1165 = vlaneseq
        %v1166 = vshrl.u32 %v1165, 7
        %v1167 = vsub.s32 %v1164, %v1166
        %v1168 = vrot.slane %v1154, %v1167
        %v1169 = vcombine.low %v1161, %v1168
        %v1170 = vcombine.low %v855, %v857
        %v1171 = vcombine.low %v864, %v872
        %v1173 = vunpack.c.l.s4 1983009808
        %v1174 = vunpack.c.0.s8 %v1173
        %v1175 = vlaneseq
        %v1176 = vshrl.u32 %v1175, 7
        %v1177 = vsub.s32 %v1174, %v1176
        %v1178 = vrot.slane %v1170, %v1177
        %v1180 = vunpack.c.l.s4 1983009808
        %v1181 = vunpack.c.0.s8 %v1180
        %v1182 = vlaneseq
        %v1183 = vshrl.u32 %v1182, 7
        %v1184 = vsub.s32 %v1181, %v1183
        %v1185 = vrot.slane %v1171, %v1184
        %v1186 = vcombine.low %v1178, %v1185
        %v1187 = vcombine.low %v880, %v879
        %v1188 = vcombine.low %v881, %v889
        %v1190 = vunpack.c.l.s4 1983009808
        %v1191 = vunpack.c.0.s8 %v1190
        %v1192 = vlaneseq
        %v1193 = vshrl.u32 %v1192, 7
        %v1194 = vsub.s32 %v1191, %v1193
        %v1195 = vrot.slane %v1187, %v1194
        %v1197 = vunpack.c.l.s4 1983009808
        %v1198 = vunpack.c.0.s8 %v1197
        %v1199 = vlaneseq
        %v1200 = vshrl.u32 %v1199, 7
        %v1201 = vsub.s32 %v1198, %v1200
        %v1202 = vrot.slane %v1188, %v1201
        %v1203 = vcombine.low %v1195, %v1202
        %v1204 = vcombine.low %v897, %v896
        %v1205 = vcombine.low %v898, %v905
        %v1207 = vunpack.c.l.s4 1983009808
        %v1208 = vunpack.c.0.s8 %v1207
        %v1209 = vlaneseq
        %v1210 = vshrl.u32 %v1209, 7
        %v1211 = vsub.s32 %v1208, %v1210
        %v1212 = vrot.slane %v1204, %v1211
        %v1214 = vunpack.c.l.s4 1983009808
        %v1215 = vunpack.c.0.s8 %v1214
        %v1216 = vlaneseq
        %v1217 = vshrl.u32 %v1216, 7
        %v1218 = vsub.s32 %v1215, %v1217
        %v1219 = vrot.slane %v1205, %v1218
        %v1220 = vcombine.low %v1212, %v1219
        %vm1221 = vcmask 72704
        %v1222 = vsel %vm1221, %v931, 0
        %v1224 = vsel %vm1221, %v948, 0
        %v1226 = vsel %vm1221, %v965, 0
        %v1228 = vsel %vm1221, %v982, 0
        %v1230 = vsel %vm1221, %v999, 0
        %v1232 = vsel %vm1221, %v1016, 0
        %v1234 = vsel %vm1221, %v1033, 0
        %v1236 = vsel %vm1221, %v1050, 0
        %v1238 = vsel %vm1221, %v1067, 0
        %v1240 = vsel %vm1221, %v1084, 0
        %v1242 = vsel %vm1221, %v1101, 0
        %v1244 = vsel %vm1221, %v1118, 0
        %v1246 = vsel %vm1221, %v1135, 0
        %v1248 = vsel %vm1221, %v1152, 0
        %v1250 = vsel %vm1221, %v1169, 0
        %v1252 = vsel %vm1221, %v1186, 0
        %v1254 = vsel %vm1221, %v1203, 0
        %v1256 = vsel %vm1221, %v1220, 0
        %vm1258 = vcmask 1040384
        %v1260 = vsel %vm1258, %v907, 0
        %1262 = vmatprep.subr.mxu0 0.0
        %1263 = vmatpush1.msra.mxu0 %v906
        %1264 = vmatprep.subr.mxu0 0.0
        %1265 = vmatpush1.msra.mxu0 %v1260
        %1266 = vmatprep.subr.mxu0 0.0
        %1267 = vmatpush1.msra.mxu0 0.0
        %1268 = vmatprep.subr.mxu0 0.0
        %1269 = vmatpush1.msra.mxu0 0.0
        %1270 = vmatprep.subr.mxu0 0.0
        %1271 = vmatpush1.msra.mxu0 0.0
        %1272 = vmatprep.subr.mxu0 0.0
        %1273 = vmatpush1.msra.mxu0 0.0
        %1274 = vmatprep.subr.mxu0 0.0
        %1275 = vmatpush1.msra.mxu0 0.0
        %1276 = vmatprep.subr.mxu0 0.0
        %1277 = vmatpush1.msra.mxu0 0.0
        %1278 = vmatprep.subr.mxu0 0.0
        %1279 = vmatpush1.msra.mxu0 0.0
        %1280 = vmatprep.subr.mxu0 0.0
        %1281 = vmatpush1.msra.mxu0 0.0
        %1282 = vmatprep.subr.mxu0 0.0
        %1283 = vmatpush1.msra.mxu0 0.0
        %1284 = vmatprep.subr.mxu0 0.0
        %1285 = vmatpush1.msra.mxu0 0.0
        %1286 = vmatprep.subr.mxu0 0.0
        %1287 = vmatpush1.msra.mxu0 0.0
        %1288 = vmatprep.subr.mxu0 0.0
        %1289 = vmatpush1.msra.mxu0 0.0
        %1290 = vmatprep.subr.mxu0 0.0
        %1291 = vmatpush1.msra.mxu0 0.0
        %1292 = vmatprep.subr.mxu0 0.0
        %1293 = vmatpush1.msra.mxu0 0.0
        %1294 = vmatprep.subr.mxu0 0.0
        %1295 = vmatpush1.msra.mxu0 0.0
        %1296 = vmatprep.subr.mxu0 0.0
        %1297 = vmatpush1.msra.mxu0 0.0
        %1298 = vmatprep.subr.mxu0 0.0
        %1299 = vmatpush1.msra.mxu0 0.0
        %1300 = vmatprep.subr.mxu0 0.0
        %1301 = vmatpush1.msra.mxu0 0.0
        %1302 = vmatprep.subr.mxu0 0.0
        %1303 = vmatpush1.msra.mxu0 0.0
        %1304 = vmatprep.subr.mxu0 0.0
        %1305 = vmatpush1.msra.mxu0 0.0
        %1306 = vmatprep.subr.mxu0 0.0
        %1307 = vmatpush1.msra.mxu0 0.0
        %1308 = vmatprep.subr.mxu0 0.0
        %1309 = vmatpush1.msra.mxu0 0.0
        %1310 = vmatprep.subr.mxu0 0.0
        %1311 = vmatpush1.msra.mxu0 0.0
        %1312 = vmatprep.subr.mxu0 0.0
        %1313 = vmatpush1.msra.mxu0 0.0
        %1314 = vmatprep.subr.mxu0 0.0
        %1315 = vmatpush1.msra.mxu0 0.0
        %1316 = vmatprep.subr.mxu0 0.0
        %1317 = vmatpush1.msra.mxu0 0.0
        %1318 = vmatprep.subr.mxu0 0.0
        %1319 = vmatpush1.msra.mxu0 0.0
        %1320 = vmatprep.subr.mxu0 0.0
        %1321 = vmatpush1.msra.mxu0 0.0
        %1322 = vmatprep.subr.mxu0 0.0
        %1323 = vmatpush1.msra.mxu0 0.0
        %1324 = vmatprep.subr.mxu0 0.0
        %1325 = vmatpush1.msra.mxu0 0.0
        %1326 = vmatprep.mubr.f32.mxu0 0.0
        %1327 = vmatmul.mubr.f32.gmra.mrb[0].mxu0 %v1222
        %v1328 = vpop.f32.mrb[0].mxu0
        %v1329 = vadd.f32 %v913, %v1328
        %v1330 = vpop.f32.mrb[0].mxu0
        %1331 = vmatprep.mubr.f32.mxu0 0.0
        %1332 = vmatmul.mubr.f32.gmra.mrb[0].mxu0 %v1224
        %v1333 = vpop.f32.mrb[0].mxu0
        %v1334 = vadd.f32 %v913, %v1333
        %v1335 = vpop.f32.mrb[0].mxu0
        %1336 = vmatprep.mubr.f32.mxu0 0.0
        %1337 = vmatmul.mubr.f32.gmra.mrb[0].mxu0 %v1226
        %v1338 = vpop.f32.mrb[0].mxu0
        %v1339 = vadd.f32 %v913, %v1338
        %v1340 = vpop.f32.mrb[0].mxu0
        %1341 = vmatprep.mubr.f32.mxu0 0.0
        %1342 = vmatmul.mubr.f32.gmra.mrb[0].mxu0 %v1228
        %v1343 = vpop.f32.mrb[0].mxu0
        %v1344 = vadd.f32 %v913, %v1343
        %v1345 = vpop.f32.mrb[0].mxu0
        %1346 = vmatprep.mubr.f32.mxu0 0.0
        %1347 = vmatmul.mubr.f32.gmra.mrb[0].mxu0 %v1230
        %v1348 = vpop.f32.mrb[0].mxu0
        %v1349 = vadd.f32 %v913, %v1348
        %v1350 = vpop.f32.mrb[0].mxu0
        %1351 = vmatprep.mubr.f32.mxu0 0.0
        %1352 = vmatmul.mubr.f32.gmra.mrb[0].mxu0 %v1232
        %v1353 = vpop.f32.mrb[0].mxu0
        %v1354 = vadd.f32 %v913, %v1353
        %v1355 = vpop.f32.mrb[0].mxu0
        %1356 = vmatprep.mubr.f32.mxu0 0.0
        %1357 = vmatmul.mubr.f32.gmra.mrb[0].mxu0 %v1234
        %v1358 = vpop.f32.mrb[0].mxu0
        %v1359 = vadd.f32 %v913, %v1358
        %v1360 = vpop.f32.mrb[0].mxu0
        %1361 = vmatprep.mubr.f32.mxu0 0.0
        %1362 = vmatmul.mubr.f32.gmra.mrb[0].mxu0 %v1236
        %v1363 = vpop.f32.mrb[0].mxu0
        %v1364 = vadd.f32 %v913, %v1363
        %v1365 = vpop.f32.mrb[0].mxu0
        %1366 = vmatprep.mubr.f32.mxu0 0.0
        %1367 = vmatmul.mubr.f32.gmra.mrb[0].mxu0 %v1238
        %v1368 = vpop.f32.mrb[0].mxu0
        %v1369 = vadd.f32 %v913, %v1368
        %v1370 = vpop.f32.mrb[0].mxu0
        %1371 = vmatprep.mubr.f32.mxu0 0.0
        %1372 = vmatmul.mubr.f32.gmra.mrb[0].mxu0 %v1240
        %v1373 = vpop.f32.mrb[0].mxu0
        %v1374 = vadd.f32 %v913, %v1373
        %v1375 = vpop.f32.mrb[0].mxu0
        %1376 = vmatprep.mubr.f32.mxu0 0.0
        %1377 = vmatmul.mubr.f32.gmra.mrb[0].mxu0 %v1242
        %v1378 = vpop.f32.mrb[0].mxu0
        %v1379 = vadd.f32 %v913, %v1378
        %v1380 = vpop.f32.mrb[0].mxu0
        %1381 = vmatprep.mubr.f32.mxu0 0.0
        %1382 = vmatmul.mubr.f32.gmra.mrb[0].mxu0 %v1244
        %v1383 = vpop.f32.mrb[0].mxu0
        %v1384 = vadd.f32 %v913, %v1383
        %v1385 = vpop.f32.mrb[0].mxu0
        %1386 = vmatprep.mubr.f32.mxu0 0.0
        %1387 = vmatmul.mubr.f32.gmra.mrb[0].mxu0 %v1246
        %v1388 = vpop.f32.mrb[0].mxu0
        %v1389 = vadd.f32 %v913, %v1388
        %v1390 = vpop.f32.mrb[0].mxu0
        %1391 = vmatprep.mubr.f32.mxu0 0.0
        %1392 = vmatmul.mubr.f32.gmra.mrb[0].mxu0 %v1248
        %v1393 = vpop.f32.mrb[0].mxu0
        %v1394 = vadd.f32 %v913, %v1393
        %v1395 = vpop.f32.mrb[0].mxu0
        %1396 = vmatprep.mubr.f32.mxu0 0.0
        %1397 = vmatmul.mubr.f32.gmra.mrb[0].mxu0 %v1250
        %v1398 = vpop.f32.mrb[0].mxu0
        %v1399 = vadd.f32 %v913, %v1398
        %v1400 = vpop.f32.mrb[0].mxu0
        %1401 = vmatprep.mubr.f32.mxu0 0.0
        %1402 = vmatmul.mubr.f32.gmra.mrb[0].mxu0 %v1252
        %v1403 = vpop.f32.mrb[0].mxu0
        %v1404 = vadd.f32 %v913, %v1403
        %v1405 = vpop.f32.mrb[0].mxu0
        %1406 = vmatprep.mubr.f32.mxu0 0.0
        %1407 = vmatmul.mubr.f32.gmra.mrb[0].mxu0 %v1254
        %v1408 = vpop.f32.mrb[0].mxu0
        %v1409 = vadd.f32 %v913, %v1408
        %v1410 = vpop.f32.mrb[0].mxu0
        %1411 = vmatprep.mubr.f32.mxu0 0.0
        %1412 = vmatmul.mubr.f32.gmra.mrb[0].mxu0 %v1256
        %v1413 = vpop.f32.mrb[0].mxu0
        %v1414 = vadd.f32 %v913, %v1413
        %v1415 = vpop.f32.mrb[0].mxu0
        %1416 = vdwg.mxu0
        %v1417 = vmax.f32 %v1329, 0.0
        %v1418 = vmax.f32 %v1334, 0.0
        %v1419 = vmax.f32 %v1339, 0.0
        %v1420 = vmax.f32 %v1344, 0.0
        %v1421 = vmax.f32 %v1349, 0.0
        %v1422 = vmax.f32 %v1354, 0.0
        %v1423 = vmax.f32 %v1359, 0.0
        %v1424 = vmax.f32 %v1364, 0.0
        %v1425 = vmax.f32 %v1369, 0.0
        %v1426 = vmax.f32 %v1374, 0.0
        %v1427 = vmax.f32 %v1379, 0.0
        %v1428 = vmax.f32 %v1384, 0.0
        %v1429 = vmax.f32 %v1389, 0.0
        %v1430 = vmax.f32 %v1394, 0.0
        %v1431 = vmax.f32 %v1399, 0.0
        %v1432 = vmax.f32 %v1404, 0.0
        %v1433 = vmax.f32 %v1409, 0.0
        %v1434 = vmax.f32 %v1414, 0.0
        %v1453 = vcombine.high %v1417, %v1417
        %v1455 = vunpack.c.l.s4 1983009808
        %v1456 = vunpack.c.0.s8 %v1455
        %v1457 = vlaneseq
        %v1458 = vshrl.u32 %v1457, 7
        %v1459 = vsub.s32 %v1456, %v1458
        %v1460 = vrot.slane %v1417, %v1459
        %v1462 = vunpack.c.l.s4 1983009808
        %v1463 = vunpack.c.0.s8 %v1462
        %v1464 = vlaneseq
        %v1465 = vshrl.u32 %v1464, 7
        %v1466 = vsub.s32 %v1463, %v1465
        %v1467 = vrot.slane %v1453, %v1466
        %v1468 = vcombine.high %v1460, %v1460
        %v1469 = vcombine.high %v1467, %v1467
        %v1470 = vcombine.high %v1418, %v1418
        %v1472 = vunpack.c.l.s4 1983009808
        %v1473 = vunpack.c.0.s8 %v1472
        %v1474 = vlaneseq
        %v1475 = vshrl.u32 %v1474, 7
        %v1476 = vsub.s32 %v1473, %v1475
        %v1477 = vrot.slane %v1418, %v1476
        %v1479 = vunpack.c.l.s4 1983009808
        %v1480 = vunpack.c.0.s8 %v1479
        %v1481 = vlaneseq
        %v1482 = vshrl.u32 %v1481, 7
        %v1483 = vsub.s32 %v1480, %v1482
        %v1484 = vrot.slane %v1470, %v1483
        %v1485 = vcombine.high %v1477, %v1477
        %v1486 = vcombine.high %v1484, %v1484
        %v1487 = vcombine.high %v1419, %v1419
        %v1489 = vunpack.c.l.s4 1983009808
        %v1490 = vunpack.c.0.s8 %v1489
        %v1491 = vlaneseq
        %v1492 = vshrl.u32 %v1491, 7
        %v1493 = vsub.s32 %v1490, %v1492
        %v1494 = vrot.slane %v1419, %v1493
        %v1496 = vunpack.c.l.s4 1983009808
        %v1497 = vunpack.c.0.s8 %v1496
        %v1498 = vlaneseq
        %v1499 = vshrl.u32 %v1498, 7
        %v1500 = vsub.s32 %v1497, %v1499
        %v1501 = vrot.slane %v1487, %v1500
        %v1502 = vcombine.high %v1494, %v1494
        %v1503 = vcombine.high %v1501, %v1501
        %v1504 = vcombine.high %v1420, %v1420
        %v1506 = vunpack.c.l.s4 1983009808
        %v1507 = vunpack.c.0.s8 %v1506
        %v1508 = vlaneseq
        %v1509 = vshrl.u32 %v1508, 7
        %v1510 = vsub.s32 %v1507, %v1509
        %v1511 = vrot.slane %v1420, %v1510
        %v1513 = vunpack.c.l.s4 1983009808
        %v1514 = vunpack.c.0.s8 %v1513
        %v1515 = vlaneseq
        %v1516 = vshrl.u32 %v1515, 7
        %v1517 = vsub.s32 %v1514, %v1516
        %v1518 = vrot.slane %v1504, %v1517
        %v1519 = vcombine.high %v1511, %v1511
        %v1520 = vcombine.high %v1518, %v1518
        %v1521 = vcombine.high %v1421, %v1421
        %v1523 = vunpack.c.l.s4 1983009808
        %v1524 = vunpack.c.0.s8 %v1523
        %v1525 = vlaneseq
        %v1526 = vshrl.u32 %v1525, 7
        %v1527 = vsub.s32 %v1524, %v1526
        %v1528 = vrot.slane %v1421, %v1527
        %v1530 = vunpack.c.l.s4 1983009808
        %v1531 = vunpack.c.0.s8 %v1530
        %v1532 = vlaneseq
        %v1533 = vshrl.u32 %v1532, 7
        %v1534 = vsub.s32 %v1531, %v1533
        %v1535 = vrot.slane %v1521, %v1534
        %v1536 = vcombine.high %v1528, %v1528
        %v1537 = vcombine.high %v1535, %v1535
        %v1538 = vcombine.high %v1422, %v1422
        %v1540 = vunpack.c.l.s4 1983009808
        %v1541 = vunpack.c.0.s8 %v1540
        %v1542 = vlaneseq
        %v1543 = vshrl.u32 %v1542, 7
        %v1544 = vsub.s32 %v1541, %v1543
        %v1545 = vrot.slane %v1422, %v1544
        %v1547 = vunpack.c.l.s4 1983009808
        %v1548 = vunpack.c.0.s8 %v1547
        %v1549 = vlaneseq
        %v1550 = vshrl.u32 %v1549, 7
        %v1551 = vsub.s32 %v1548, %v1550
        %v1552 = vrot.slane %v1538, %v1551
        %v1553 = vcombine.high %v1545, %v1545
        %v1554 = vcombine.high %v1552, %v1552
        %v1555 = vcombine.high %v1423, %v1423
        %v1557 = vunpack.c.l.s4 1983009808
        %v1558 = vunpack.c.0.s8 %v1557
        %v1559 = vlaneseq
        %v1560 = vshrl.u32 %v1559, 7
        %v1561 = vsub.s32 %v1558, %v1560
        %v1562 = vrot.slane %v1423, %v1561
        %v1564 = vunpack.c.l.s4 1983009808
        %v1565 = vunpack.c.0.s8 %v1564
        %v1566 = vlaneseq
        %v1567 = vshrl.u32 %v1566, 7
        %v1568 = vsub.s32 %v1565, %v1567
        %v1569 = vrot.slane %v1555, %v1568
        %v1570 = vcombine.high %v1562, %v1562
        %v1571 = vcombine.high %v1569, %v1569
        %v1572 = vcombine.high %v1424, %v1424
        %v1574 = vunpack.c.l.s4 1983009808
        %v1575 = vunpack.c.0.s8 %v1574
        %v1576 = vlaneseq
        %v1577 = vshrl.u32 %v1576, 7
        %v1578 = vsub.s32 %v1575, %v1577
        %v1579 = vrot.slane %v1424, %v1578
        %v1581 = vunpack.c.l.s4 1983009808
        %v1582 = vunpack.c.0.s8 %v1581
        %v1583 = vlaneseq
        %v1584 = vshrl.u32 %v1583, 7
        %v1585 = vsub.s32 %v1582, %v1584
        %v1586 = vrot.slane %v1572, %v1585
        %v1587 = vcombine.high %v1579, %v1579
        %v1588 = vcombine.high %v1586, %v1586
        %v1589 = vcombine.high %v1425, %v1425
        %v1591 = vunpack.c.l.s4 1983009808
        %v1592 = vunpack.c.0.s8 %v1591
        %v1593 = vlaneseq
        %v1594 = vshrl.u32 %v1593, 7
        %v1595 = vsub.s32 %v1592, %v1594
        %v1596 = vrot.slane %v1425, %v1595
        %v1598 = vunpack.c.l.s4 1983009808
        %v1599 = vunpack.c.0.s8 %v1598
        %v1600 = vlaneseq
        %v1601 = vshrl.u32 %v1600, 7
        %v1602 = vsub.s32 %v1599, %v1601
        %v1603 = vrot.slane %v1589, %v1602
        %v1604 = vcombine.high %v1596, %v1596
        %v1605 = vcombine.high %v1603, %v1603
        %v1606 = vcombine.high %v1426, %v1426
        %v1608 = vunpack.c.l.s4 1983009808
        %v1609 = vunpack.c.0.s8 %v1608
        %v1610 = vlaneseq
        %v1611 = vshrl.u32 %v1610, 7
        %v1612 = vsub.s32 %v1609, %v1611
        %v1613 = vrot.slane %v1426, %v1612
        %v1615 = vunpack.c.l.s4 1983009808
        %v1616 = vunpack.c.0.s8 %v1615
        %v1617 = vlaneseq
        %v1618 = vshrl.u32 %v1617, 7
        %v1619 = vsub.s32 %v1616, %v1618
        %v1620 = vrot.slane %v1606, %v1619
        %v1621 = vcombine.high %v1613, %v1613
        %v1622 = vcombine.high %v1620, %v1620
        %v1623 = vcombine.high %v1427, %v1427
        %v1625 = vunpack.c.l.s4 1983009808
        %v1626 = vunpack.c.0.s8 %v1625
        %v1627 = vlaneseq
        %v1628 = vshrl.u32 %v1627, 7
        %v1629 = vsub.s32 %v1626, %v1628
        %v1630 = vrot.slane %v1427, %v1629
        %v1632 = vunpack.c.l.s4 1983009808
        %v1633 = vunpack.c.0.s8 %v1632
        %v1634 = vlaneseq
        %v1635 = vshrl.u32 %v1634, 7
        %v1636 = vsub.s32 %v1633, %v1635
        %v1637 = vrot.slane %v1623, %v1636
        %v1638 = vcombine.high %v1630, %v1630
        %v1639 = vcombine.high %v1637, %v1637
        %v1640 = vcombine.high %v1428, %v1428
        %v1642 = vunpack.c.l.s4 1983009808
        %v1643 = vunpack.c.0.s8 %v1642
        %v1644 = vlaneseq
        %v1645 = vshrl.u32 %v1644, 7
        %v1646 = vsub.s32 %v1643, %v1645
        %v1647 = vrot.slane %v1428, %v1646
        %v1649 = vunpack.c.l.s4 1983009808
        %v1650 = vunpack.c.0.s8 %v1649
        %v1651 = vlaneseq
        %v1652 = vshrl.u32 %v1651, 7
        %v1653 = vsub.s32 %v1650, %v1652
        %v1654 = vrot.slane %v1640, %v1653
        %v1655 = vcombine.high %v1647, %v1647
        %v1656 = vcombine.high %v1654, %v1654
        %v1657 = vcombine.high %v1429, %v1429
        %v1659 = vunpack.c.l.s4 1983009808
        %v1660 = vunpack.c.0.s8 %v1659
        %v1661 = vlaneseq
        %v1662 = vshrl.u32 %v1661, 7
        %v1663 = vsub.s32 %v1660, %v1662
        %v1664 = vrot.slane %v1429, %v1663
        %v1666 = vunpack.c.l.s4 1983009808
        %v1667 = vunpack.c.0.s8 %v1666
        %v1668 = vlaneseq
        %v1669 = vshrl.u32 %v1668, 7
        %v1670 = vsub.s32 %v1667, %v1669
        %v1671 = vrot.slane %v1657, %v1670
        %v1672 = vcombine.high %v1664, %v1664
        %v1673 = vcombine.high %v1671, %v1671
        %v1674 = vcombine.high %v1430, %v1430
        %v1676 = vunpack.c.l.s4 1983009808
        %v1677 = vunpack.c.0.s8 %v1676
        %v1678 = vlaneseq
        %v1679 = vshrl.u32 %v1678, 7
        %v1680 = vsub.s32 %v1677, %v1679
        %v1681 = vrot.slane %v1430, %v1680
        %v1683 = vunpack.c.l.s4 1983009808
        %v1684 = vunpack.c.0.s8 %v1683
        %v1685 = vlaneseq
        %v1686 = vshrl.u32 %v1685, 7
        %v1687 = vsub.s32 %v1684, %v1686
        %v1688 = vrot.slane %v1674, %v1687
        %v1689 = vcombine.high %v1681, %v1681
        %v1690 = vcombine.high %v1688, %v1688
        %v1691 = vcombine.high %v1431, %v1431
        %v1693 = vunpack.c.l.s4 1983009808
        %v1694 = vunpack.c.0.s8 %v1693
        %v1695 = vlaneseq
        %v1696 = vshrl.u32 %v1695, 7
        %v1697 = vsub.s32 %v1694, %v1696
        %v1698 = vrot.slane %v1431, %v1697
        %v1700 = vunpack.c.l.s4 1983009808
        %v1701 = vunpack.c.0.s8 %v1700
        %v1702 = vlaneseq
        %v1703 = vshrl.u32 %v1702, 7
        %v1704 = vsub.s32 %v1701, %v1703
        %v1705 = vrot.slane %v1691, %v1704
        %v1706 = vcombine.high %v1698, %v1698
        %v1707 = vcombine.high %v1705, %v1705
        %v1708 = vcombine.high %v1432, %v1432
        %v1710 = vunpack.c.l.s4 1983009808
        %v1711 = vunpack.c.0.s8 %v1710
        %v1712 = vlaneseq
        %v1713 = vshrl.u32 %v1712, 7
        %v1714 = vsub.s32 %v1711, %v1713
        %v1715 = vrot.slane %v1432, %v1714
        %v1717 = vunpack.c.l.s4 1983009808
        %v1718 = vunpack.c.0.s8 %v1717
        %v1719 = vlaneseq
        %v1720 = vshrl.u32 %v1719, 7
        %v1721 = vsub.s32 %v1718, %v1720
        %v1722 = vrot.slane %v1708, %v1721
        %v1723 = vcombine.high %v1715, %v1715
        %v1724 = vcombine.high %v1722, %v1722
        %v1725 = vcombine.high %v1433, %v1433
        %v1727 = vunpack.c.l.s4 1983009808
        %v1728 = vunpack.c.0.s8 %v1727
        %v1729 = vlaneseq
        %v1730 = vshrl.u32 %v1729, 7
        %v1731 = vsub.s32 %v1728, %v1730
        %v1732 = vrot.slane %v1433, %v1731
        %v1734 = vunpack.c.l.s4 1983009808
        %v1735 = vunpack.c.0.s8 %v1734
        %v1736 = vlaneseq
        %v1737 = vshrl.u32 %v1736, 7
        %v1738 = vsub.s32 %v1735, %v1737
        %v1739 = vrot.slane %v1725, %v1738
        %v1740 = vcombine.high %v1732, %v1732
        %v1741 = vcombine.high %v1739, %v1739
        %v1742 = vcombine.high %v1434, %v1434
        %v1744 = vunpack.c.l.s4 1983009808
        %v1745 = vunpack.c.0.s8 %v1744
        %v1746 = vlaneseq
        %v1747 = vshrl.u32 %v1746, 7
        %v1748 = vsub.s32 %v1745, %v1747
        %v1749 = vrot.slane %v1434, %v1748
        %v1751 = vunpack.c.l.s4 1983009808
        %v1752 = vunpack.c.0.s8 %v1751
        %v1753 = vlaneseq
        %v1754 = vshrl.u32 %v1753, 7
        %v1755 = vsub.s32 %v1752, %v1754
        %v1756 = vrot.slane %v1742, %v1755
        %v1757 = vcombine.high %v1749, %v1749
        %v1758 = vcombine.high %v1756, %v1756
        %v1831 = vld [vmem:[#allocation9] sm:$0x7]
        %v1832 = vlaneseq
        %v1833 = vshrl.u32 %v1832, 7
        %v1834 = vsub.s32 0, %v1833
        %v1835 = vrot.slane %v1831, %v1834
        %v1837 = vcombine.high %v1835, %v1835
        %v1839 = vunpack.c.l.s4 1983009808
        %v1840 = vunpack.c.0.s8 %v1839
        %v1841 = vlaneseq
        %v1842 = vshrl.u32 %v1841, 7
        %v1843 = vsub.s32 %v1840, %v1842
        %v1844 = vrot.slane %v1835, %v1843
        %v1846 = vunpack.c.l.s4 1983009808
        %v1847 = vunpack.c.0.s8 %v1846
        %v1848 = vlaneseq
        %v1849 = vshrl.u32 %v1848, 7
        %v1850 = vsub.s32 %v1847, %v1849
        %v1851 = vrot.slane %v1837, %v1850
        %v1852 = vcombine.high %v1844, %v1844
        %v1853 = vcombine.high %v1851, %v1851
        %v1858 = vmul.f32 %v1460, %v1844
        %v1859 = vmul.f32 %v1468, %v1852
        %v1860 = vmul.f32 %v1467, %v1851
        %v1861 = vmul.f32 %v1469, %v1853
        %v1862 = vmul.f32 %v1477, %v1844
        %v1863 = vmul.f32 %v1485, %v1852
        %v1864 = vmul.f32 %v1484, %v1851
        %v1865 = vmul.f32 %v1486, %v1853
        %v1866 = vmul.f32 %v1502, %v1844
        %v1867 = vmul.f32 %v1501, %v1852
        %v1868 = vmul.f32 %v1503, %v1851
        %v1869 = vmul.f32 %v1511, %v1853
        %v1870 = vmul.f32 %v1519, %v1844
        %v1871 = vmul.f32 %v1518, %v1852
        %v1872 = vmul.f32 %v1520, %v1851
        %v1873 = vmul.f32 %v1528, %v1853
        %v1874 = vmul.f32 %v1535, %v1844
        %v1875 = vmul.f32 %v1537, %v1852
        %v1876 = vmul.f32 %v1545, %v1851
        %v1877 = vmul.f32 %v1553, %v1853
        %v1878 = vmul.f32 %v1552, %v1844
        %v1879 = vmul.f32 %v1554, %v1852
        %v1880 = vmul.f32 %v1562, %v1851
        %v1881 = vmul.f32 %v1570, %v1853
        %v1882 = vmul.f32 %v1571, %v1844
        %v1883 = vmul.f32 %v1579, %v1852
        %v1884 = vmul.f32 %v1587, %v1851
        %v1885 = vmul.f32 %v1586, %v1853
        %v1886 = vmul.f32 %v1588, %v1844
        %v1887 = vmul.f32 %v1596, %v1852
        %v1888 = vmul.f32 %v1604, %v1851
        %v1889 = vmul.f32 %v1603, %v1853
        %v1890 = vmul.f32 %v1613, %v1844
        %v1891 = vmul.f32 %v1621, %v1852
        %v1892 = vmul.f32 %v1620, %v1851
        %v1893 = vmul.f32 %v1622, %v1853
        %v1894 = vmul.f32 %v1630, %v1844
        %v1895 = vmul.f32 %v1638, %v1852
        %v1896 = vmul.f32 %v1637, %v1851
        %v1897 = vmul.f32 %v1639, %v1853
        %v1898 = vmul.f32 %v1655, %v1844
        %v1899 = vmul.f32 %v1654, %v1852
        %v1900 = vmul.f32 %v1656, %v1851
        %v1901 = vmul.f32 %v1664, %v1853
        %v1902 = vmul.f32 %v1672, %v1844
        %v1903 = vmul.f32 %v1671, %v1852
        %v1904 = vmul.f32 %v1673, %v1851
        %v1905 = vmul.f32 %v1681, %v1853
        %v1906 = vmul.f32 %v1688, %v1844
        %v1907 = vmul.f32 %v1690, %v1852
        %v1908 = vmul.f32 %v1698, %v1851
        %v1909 = vmul.f32 %v1706, %v1853
        %v1910 = vmul.f32 %v1705, %v1844
        %v1911 = vmul.f32 %v1707, %v1852
        %v1912 = vmul.f32 %v1715, %v1851
        %v1913 = vmul.f32 %v1723, %v1853
        %v1914 = vmul.f32 %v1724, %v1844
        %v1915 = vmul.f32 %v1732, %v1852
        %v1916 = vmul.f32 %v1740, %v1851
        %v1917 = vmul.f32 %v1739, %v1853
        %v1918 = vmul.f32 %v1741, %v1844
        %v1919 = vmul.f32 %v1749, %v1852
        %v1920 = vmul.f32 %v1757, %v1851
        %v1921 = vmul.f32 %v1756, %v1853
        %v1922 = vlaneseq
        %v1923 = vshrl.u32 %v1922, 7
        %v1924 = vsub.s32 1, %v1923
        %v1925 = vrot.slane %v1831, %v1924
        %v1927 = vcombine.high %v1925, %v1925
        %v1929 = vunpack.c.l.s4 1983009808
        %v1930 = vunpack.c.0.s8 %v1929
        %v1931 = vlaneseq
        %v1932 = vshrl.u32 %v1931, 7
        %v1933 = vsub.s32 %v1930, %v1932
        %v1934 = vrot.slane %v1925, %v1933
        %v1936 = vunpack.c.l.s4 1983009808
        %v1937 = vunpack.c.0.s8 %v1936
        %v1938 = vlaneseq
        %v1939 = vshrl.u32 %v1938, 7
        %v1940 = vsub.s32 %v1937, %v1939
        %v1941 = vrot.slane %v1927, %v1940
        %v1942 = vcombine.high %v1934, %v1934
        %v1943 = vcombine.high %v1941, %v1941
        %vm1944 = vcmask 1042434
        %vm1945 = vmor %vm1258, %vm1944
        %vm1946 = vcmask 1044484
        %vm1947 = vmor %vm1945, %vm1946
        %vm1948 = vcmask 1046534
        %vm1949 = vmor %vm1947, %vm1948
        %v1950 = vrot.slane %v1934, 7
        %v1951 = vrot.slane %v1950, 2
        %v1952 = vrot.slane %v1942, 7
        %v1953 = vsel %vm1949, %v1951, %v1952
        %v1954 = vrot.slane %v1952, 2
        %v1955 = vrot.slane %v1941, 7
        %v1956 = vsel %vm1949, %v1954, %v1955
        %v1957 = vrot.slane %v1955, 2
        %v1958 = vrot.slane %v1943, 7
        %v1959 = vsel %vm1949, %v1957, %v1958
        %v1960 = vrot.slane %v1958, 2
        %v1961 = vsel %vm1949, %v1960, %v1950
        %v1968 = vmul.f32 %v1460, %v1950
        %v1969 = vmul.f32 %v1468, %v1953
        %v1970 = vmul.f32 %v1467, %v1956
        %v1971 = vmul.f32 %v1469, %v1959
        %v1972 = vmul.f32 %v1477, %v1961
        %v1973 = vmul.f32 %v1485, %v1953
        %v1974 = vmul.f32 %v1484, %v1956
        %v1975 = vmul.f32 %v1486, %v1959
        %v1976 = vmul.f32 %v1494, %v1960
        %v1977 = vmul.f32 %v1502, %v1950
        %v1978 = vmul.f32 %v1501, %v1953
        %v1979 = vmul.f32 %v1503, %v1956
        %v1980 = vmul.f32 %v1511, %v1959
        %v1981 = vmul.f32 %v1519, %v1961
        %v1982 = vmul.f32 %v1518, %v1953
        %v1983 = vmul.f32 %v1520, %v1956
        %v1984 = vmul.f32 %v1528, %v1959
        %v1985 = vmul.f32 %v1536, %v1960
        %v1986 = vmul.f32 %v1535, %v1950
        %v1987 = vmul.f32 %v1537, %v1953
        %v1988 = vmul.f32 %v1545, %v1956
        %v1989 = vmul.f32 %v1553, %v1959
        %v1990 = vmul.f32 %v1552, %v1961
        %v1991 = vmul.f32 %v1554, %v1953
        %v1992 = vmul.f32 %v1562, %v1956
        %v1993 = vmul.f32 %v1570, %v1959
        %v1994 = vmul.f32 %v1569, %v1960
        %v1995 = vmul.f32 %v1571, %v1950
        %v1996 = vmul.f32 %v1579, %v1953
        %v1997 = vmul.f32 %v1587, %v1956
        %v1998 = vmul.f32 %v1586, %v1959
        %v1999 = vmul.f32 %v1588, %v1961
        %v2000 = vmul.f32 %v1596, %v1953
        %v2001 = vmul.f32 %v1604, %v1956
        %v2002 = vmul.f32 %v1603, %v1959
        %v2003 = vmul.f32 %v1605, %v1960
        %v2004 = vmul.f32 %v1613, %v1950
        %v2005 = vmul.f32 %v1621, %v1953
        %v2006 = vmul.f32 %v1620, %v1956
        %v2007 = vmul.f32 %v1622, %v1959
        %v2008 = vmul.f32 %v1630, %v1961
        %v2009 = vmul.f32 %v1638, %v1953
        %v2010 = vmul.f32 %v1637, %v1956
        %v2011 = vmul.f32 %v1639, %v1959
        %v2012 = vmul.f32 %v1647, %v1960
        %v2013 = vmul.f32 %v1655, %v1950
        %v2014 = vmul.f32 %v1654, %v1953
        %v2015 = vmul.f32 %v1656, %v1956
        %v2016 = vmul.f32 %v1664, %v1959
        %v2017 = vmul.f32 %v1672, %v1961
        %v2018 = vmul.f32 %v1671, %v1953
        %v2019 = vmul.f32 %v1673, %v1956
        %v2020 = vmul.f32 %v1681, %v1959
        %v2021 = vmul.f32 %v1689, %v1960
        %v2022 = vmul.f32 %v1688, %v1950
        %v2023 = vmul.f32 %v1690, %v1953
        %v2024 = vmul.f32 %v1698, %v1956
        %v2025 = vmul.f32 %v1706, %v1959
        %v2026 = vmul.f32 %v1705, %v1961
        %v2027 = vmul.f32 %v1707, %v1953
        %v2028 = vmul.f32 %v1715, %v1956
        %v2029 = vmul.f32 %v1723, %v1959
        %v2030 = vmul.f32 %v1722, %v1960
        %v2031 = vmul.f32 %v1724, %v1950
        %v2032 = vmul.f32 %v1732, %v1953
        %v2033 = vmul.f32 %v1740, %v1956
        %v2034 = vmul.f32 %v1739, %v1959
        %v2035 = vmul.f32 %v1741, %v1961
        %v2036 = vmul.f32 %v1749, %v1953
        %v2037 = vmul.f32 %v1757, %v1956
        %v2038 = vmul.f32 %v1756, %v1959
        %v2039 = vmul.f32 %v1758, %v1960
        %v2112 = vrot.slane %v1968, 7
        %v2113 = vrot.slane %v2112, 2
        %v2114 = vrot.slane %v1969, 7
        %v2115 = vsel %vm1949, %v2113, %v2114
        %v2116 = vrot.slane %v2114, 2
        %v2117 = vrot.slane %v1970, 7
        %v2118 = vsel %vm1949, %v2116, %v2117
        %v2119 = vrot.slane %v2117, 2
        %v2120 = vrot.slane %v1971, 7
        %v2121 = vsel %vm1949, %v2119, %v2120
        %v2122 = vrot.slane %v2120, 2
        %v2123 = vrot.slane %v1972, 7
        %v2124 = vsel %vm1949, %v2122, %v2123
        %v2125 = vrot.slane %v2123, 2
        %v2126 = vrot.slane %v1973, 7
        %v2127 = vsel %vm1949, %v2125, %v2126
        %v2128 = vrot.slane %v2126, 2
        %v2129 = vrot.slane %v1974, 7
        %v2130 = vsel %vm1949, %v2128, %v2129
        %v2131 = vrot.slane %v2129, 2
        %v2132 = vrot.slane %v1975, 7
        %v2133 = vsel %vm1949, %v2131, %v2132
        %v2134 = vrot.slane %v2132, 2
        %v2135 = vrot.slane %v1976, 7
        %v2136 = vsel %vm1949, %v2134, %v2135
        %v2137 = vrot.slane %v1977, 7
        %v2138 = vrot.slane %v2137, 2
        %v2139 = vrot.slane %v1978, 7
        %v2140 = vsel %vm1949, %v2138, %v2139
        %v2141 = vrot.slane %v2139, 2
        %v2142 = vrot.slane %v1979, 7
        %v2143 = vsel %vm1949, %v2141, %v2142
        %v2144 = vrot.slane %v2142, 2
        %v2145 = vrot.slane %v1980, 7
        %v2146 = vsel %vm1949, %v2144, %v2145
        %v2147 = vrot.slane %v2145, 2
        %v2148 = vrot.slane %v1981, 7
        %v2149 = vsel %vm1949, %v2147, %v2148
        %v2150 = vrot.slane %v2148, 2
        %v2151 = vrot.slane %v1982, 7
        %v2152 = vsel %vm1949, %v2150, %v2151
        %v2153 = vrot.slane %v2151, 2
        %v2154 = vrot.slane %v1983, 7
        %v2155 = vsel %vm1949, %v2153, %v2154
        %v2156 = vrot.slane %v2154, 2
        %v2157 = vrot.slane %v1984, 7
        %v2158 = vsel %vm1949, %v2156, %v2157
        %v2159 = vrot.slane %v2157, 2
        %v2160 = vrot.slane %v1985, 7
        %v2161 = vsel %vm1949, %v2159, %v2160
        %v2162 = vrot.slane %v1986, 7
        %v2163 = vrot.slane %v2162, 2
        %v2164 = vrot.slane %v1987, 7
        %v2165 = vsel %vm1949, %v2163, %v2164
        %v2166 = vrot.slane %v2164, 2
        %v2167 = vrot.slane %v1988, 7
        %v2168 = vsel %vm1949, %v2166, %v2167
        %v2169 = vrot.slane %v2167, 2
        %v2170 = vrot.slane %v1989, 7
        %v2171 = vsel %vm1949, %v2169, %v2170
        %v2172 = vrot.slane %v2170, 2
        %v2173 = vrot.slane %v1990, 7
        %v2174 = vsel %vm1949, %v2172, %v2173
        %v2175 = vrot.slane %v2173, 2
        %v2176 = vrot.slane %v1991, 7
        %v2177 = vsel %vm1949, %v2175, %v2176
        %v2178 = vrot.slane %v2176, 2
        %v2179 = vrot.slane %v1992, 7
        %v2180 = vsel %vm1949, %v2178, %v2179
        %v2181 = vrot.slane %v2179, 2
        %v2182 = vrot.slane %v1993, 7
        %v2183 = vsel %vm1949, %v2181, %v2182
        %v2184 = vrot.slane %v2182, 2
        %v2185 = vrot.slane %v1994, 7
        %v2186 = vsel %vm1949, %v2184, %v2185
        %v2187 = vrot.slane %v1995, 7
        %v2188 = vrot.slane %v2187, 2
        %v2189 = vrot.slane %v1996, 7
        %v2190 = vsel %vm1949, %v2188, %v2189
        %v2191 = vrot.slane %v2189, 2
        %v2192 = vrot.slane %v1997, 7
        %v2193 = vsel %vm1949, %v2191, %v2192
        %v2194 = vrot.slane %v2192, 2
        %v2195 = vrot.slane %v1998, 7
        %v2196 = vsel %vm1949, %v2194, %v2195
        %v2197 = vrot.slane %v2195, 2
        %v2198 = vrot.slane %v1999, 7
        %v2199 = vsel %vm1949, %v2197, %v2198
        %v2200 = vrot.slane %v2198, 2
        %v2201 = vrot.slane %v2000, 7
        %v2202 = vsel %vm1949, %v2200, %v2201
        %v2203 = vrot.slane %v2201, 2
        %v2204 = vrot.slane %v2001, 7
        %v2205 = vsel %vm1949, %v2203, %v2204
        %v2206 = vrot.slane %v2204, 2
        %v2207 = vrot.slane %v2002, 7
        %v2208 = vsel %vm1949, %v2206, %v2207
        %v2209 = vrot.slane %v2207, 2
        %v2210 = vrot.slane %v2003, 7
        %v2211 = vsel %vm1949, %v2209, %v2210
        %v2212 = vrot.slane %v2004, 7
        %v2213 = vrot.slane %v2212, 2
        %v2214 = vrot.slane %v2005, 7
        %v2215 = vsel %vm1949, %v2213, %v2214
        %v2216 = vrot.slane %v2214, 2
        %v2217 = vrot.slane %v2006, 7
        %v2218 = vsel %vm1949, %v2216, %v2217
        %v2219 = vrot.slane %v2217, 2
        %v2220 = vrot.slane %v2007, 7
        %v2221 = vsel %vm1949, %v2219, %v2220
        %v2222 = vrot.slane %v2220, 2
        %v2223 = vrot.slane %v2008, 7
        %v2224 = vsel %vm1949, %v2222, %v2223
        %v2225 = vrot.slane %v2223, 2
        %v2226 = vrot.slane %v2009, 7
        %v2227 = vsel %vm1949, %v2225, %v2226
        %v2228 = vrot.slane %v2226, 2
        %v2229 = vrot.slane %v2010, 7
        %v2230 = vsel %vm1949, %v2228, %v2229
        %v2231 = vrot.slane %v2229, 2
        %v2232 = vrot.slane %v2011, 7
        %v2233 = vsel %vm1949, %v2231, %v2232
        %v2234 = vrot.slane %v2232, 2
        %v2235 = vrot.slane %v2012, 7
        %v2236 = vsel %vm1949, %v2234, %v2235
        %v2237 = vrot.slane %v2013, 7
        %v2238 = vrot.slane %v2237, 2
        %v2239 = vrot.slane %v2014, 7
        %v2240 = vsel %vm1949, %v2238, %v2239
        %v2241 = vrot.slane %v2239, 2
        %v2242 = vrot.slane %v2015, 7
        %v2243 = vsel %vm1949, %v2241, %v2242
        %v2244 = vrot.slane %v2242, 2
        %v2245 = vrot.slane %v2016, 7
        %v2246 = vsel %vm1949, %v2244, %v2245
        %v2247 = vrot.slane %v2245, 2
        %v2248 = vrot.slane %v2017, 7
        %v2249 = vsel %vm1949, %v2247, %v2248
        %v2250 = vrot.slane %v2248, 2
        %v2251 = vrot.slane %v2018, 7
        %v2252 = vsel %vm1949, %v2250, %v2251
        %v2253 = vrot.slane %v2251, 2
        %v2254 = vrot.slane %v2019, 7
        %v2255 = vsel %vm1949, %v2253, %v2254
        %v2256 = vrot.slane %v2254, 2
        %v2257 = vrot.slane %v2020, 7
        %v2258 = vsel %vm1949, %v2256, %v2257
        %v2259 = vrot.slane %v2257, 2
        %v2260 = vrot.slane %v2021, 7
        %v2261 = vsel %vm1949, %v2259, %v2260
        %v2262 = vrot.slane %v2022, 7
        %v2263 = vrot.slane %v2262, 2
        %v2264 = vrot.slane %v2023, 7
        %v2265 = vsel %vm1949, %v2263, %v2264
        %v2266 = vrot.slane %v2264, 2
        %v2267 = vrot.slane %v2024, 7
        %v2268 = vsel %vm1949, %v2266, %v2267
        %v2269 = vrot.slane %v2267, 2
        %v2270 = vrot.slane %v2025, 7
        %v2271 = vsel %vm1949, %v2269, %v2270
        %v2272 = vrot.slane %v2270, 2
        %v2273 = vrot.slane %v2026, 7
        %v2274 = vsel %vm1949, %v2272, %v2273
        %v2275 = vrot.slane %v2273, 2
        %v2276 = vrot.slane %v2027, 7
        %v2277 = vsel %vm1949, %v2275, %v2276
        %v2278 = vrot.slane %v2276, 2
        %v2279 = vrot.slane %v2028, 7
        %v2280 = vsel %vm1949, %v2278, %v2279
        %v2281 = vrot.slane %v2279, 2
        %v2282 = vrot.slane %v2029, 7
        %v2283 = vsel %vm1949, %v2281, %v2282
        %v2284 = vrot.slane %v2282, 2
        %v2285 = vrot.slane %v2030, 7
        %v2286 = vsel %vm1949, %v2284, %v2285
        %v2287 = vrot.slane %v2031, 7
        %v2288 = vrot.slane %v2287, 2
        %v2289 = vrot.slane %v2032, 7
        %v2290 = vsel %vm1949, %v2288, %v2289
        %v2291 = vrot.slane %v2289, 2
        %v2292 = vrot.slane %v2033, 7
        %v2293 = vsel %vm1949, %v2291, %v2292
        %v2294 = vrot.slane %v2292, 2
        %v2295 = vrot.slane %v2034, 7
        %v2296 = vsel %vm1949, %v2294, %v2295
        %v2297 = vrot.slane %v2295, 2
        %v2298 = vrot.slane %v2035, 7
        %v2299 = vsel %vm1949, %v2297, %v2298
        %v2300 = vrot.slane %v2298, 2
        %v2301 = vrot.slane %v2036, 7
        %v2302 = vsel %vm1949, %v2300, %v2301
        %v2303 = vrot.slane %v2301, 2
        %v2304 = vrot.slane %v2037, 7
        %v2305 = vsel %vm1949, %v2303, %v2304
        %v2306 = vrot.slane %v2304, 2
        %v2307 = vrot.slane %v2038, 7
        %v2308 = vsel %vm1949, %v2306, %v2307
        %v2309 = vrot.slane %v2307, 2
        %v2310 = vrot.slane %v2039, 7
        %v2311 = vsel %vm1949, %v2309, %v2310
        %v2376 = vadd.f32 %v1858, %v2115
        %v2377 = vadd.f32 %v1859, %v2118
        %v2378 = vadd.f32 %v1860, %v2121
        %v2379 = vadd.f32 %v1861, %v2124
        %v2380 = vadd.f32 %v1862, %v2127
        %v2381 = vadd.f32 %v1863, %v2130
        %v2382 = vadd.f32 %v1864, %v2133
        %v2383 = vadd.f32 %v1865, %v2136
        %v2384 = vadd.f32 %v1866, %v2140
        %v2385 = vadd.f32 %v1867, %v2143
        %v2386 = vadd.f32 %v1868, %v2146
        %v2387 = vadd.f32 %v1869, %v2149
        %v2388 = vadd.f32 %v1870, %v2152
        %v2389 = vadd.f32 %v1871, %v2155
        %v2390 = vadd.f32 %v1872, %v2158
        %v2391 = vadd.f32 %v1873, %v2161
        %v2392 = vadd.f32 %v1874, %v2165
        %v2393 = vadd.f32 %v1875, %v2168
        %v2394 = vadd.f32 %v1876, %v2171
        %v2395 = vadd.f32 %v1877, %v2174
        %v2396 = vadd.f32 %v1878, %v2177
        %v2397 = vadd.f32 %v1879, %v2180
        %v2398 = vadd.f32 %v1880, %v2183
        %v2399 = vadd.f32 %v1881, %v2186
        %v2400 = vadd.f32 %v1882, %v2190
        %v2401 = vadd.f32 %v1883, %v2193
        %v2402 = vadd.f32 %v1884, %v2196
        %v2403 = vadd.f32 %v1885, %v2199
        %v2404 = vadd.f32 %v1886, %v2202
        %v2405 = vadd.f32 %v1887, %v2205
        %v2406 = vadd.f32 %v1888, %v2208
        %v2407 = vadd.f32 %v1889, %v2211
        %v2408 = vadd.f32 %v1890, %v2215
        %v2409 = vadd.f32 %v1891, %v2218
        %v2410 = vadd.f32 %v1892, %v2221
        %v2411 = vadd.f32 %v1893, %v2224
        %v2412 = vadd.f32 %v1894, %v2227
        %v2413 = vadd.f32 %v1895, %v2230
        %v2414 = vadd.f32 %v1896, %v2233
        %v2415 = vadd.f32 %v1897, %v2236
        %v2416 = vadd.f32 %v1898, %v2240
        %v2417 = vadd.f32 %v1899, %v2243
        %v2418 = vadd.f32 %v1900, %v2246
        %v2419 = vadd.f32 %v1901, %v2249
        %v2420 = vadd.f32 %v1902, %v2252
        %v2421 = vadd.f32 %v1903, %v2255
        %v2422 = vadd.f32 %v1904, %v2258
        %v2423 = vadd.f32 %v1905, %v2261
        %v2424 = vadd.f32 %v1906, %v2265
        %v2425 = vadd.f32 %v1907, %v2268
        %v2426 = vadd.f32 %v1908, %v2271
        %v2427 = vadd.f32 %v1909, %v2274
        %v2428 = vadd.f32 %v1910, %v2277
        %v2429 = vadd.f32 %v1911, %v2280
        %v2430 = vadd.f32 %v1912, %v2283
        %v2431 = vadd.f32 %v1913, %v2286
        %v2432 = vadd.f32 %v1914, %v2290
        %v2433 = vadd.f32 %v1915, %v2293
        %v2434 = vadd.f32 %v1916, %v2296
        %v2435 = vadd.f32 %v1917, %v2299
        %v2436 = vadd.f32 %v1918, %v2302
        %v2437 = vadd.f32 %v1919, %v2305
        %v2438 = vadd.f32 %v1920, %v2308
        %v2439 = vadd.f32 %v1921, %v2311
        %v2440 = vlaneseq
        %v2441 = vshrl.u32 %v2440, 7
        %v2442 = vsub.s32 2, %v2441
        %v2443 = vrot.slane %v1831, %v2442
        %v2445 = vcombine.high %v2443, %v2443
        %v2447 = vunpack.c.l.s4 1983009808
        %v2448 = vunpack.c.0.s8 %v2447
        %v2449 = vlaneseq
        %v2450 = vshrl.u32 %v2449, 7
        %v2451 = vsub.s32 %v2448, %v2450
        %v2452 = vrot.slane %v2443, %v2451
        %v2454 = vunpack.c.l.s4 1983009808
        %v2455 = vunpack.c.0.s8 %v2454
        %v2456 = vlaneseq
        %v2457 = vshrl.u32 %v2456, 7
        %v2458 = vsub.s32 %v2455, %v2457
        %v2459 = vrot.slane %v2445, %v2458
        %v2460 = vcombine.high %v2452, %v2452
        %v2461 = vcombine.high %v2459, %v2459
        %v2466 = vmul.f32 %v1468, %v2452
        %v2467 = vmul.f32 %v1467, %v2460
        %v2468 = vmul.f32 %v1469, %v2459
        %v2469 = vmul.f32 %v1477, %v2461
        %v2470 = vmul.f32 %v1485, %v2452
        %v2471 = vmul.f32 %v1484, %v2460
        %v2472 = vmul.f32 %v1486, %v2459
        %v2473 = vmul.f32 %v1494, %v2461
        %v2474 = vmul.f32 %v1501, %v2452
        %v2475 = vmul.f32 %v1503, %v2460
        %v2476 = vmul.f32 %v1511, %v2459
        %v2477 = vmul.f32 %v1519, %v2461
        %v2478 = vmul.f32 %v1518, %v2452
        %v2479 = vmul.f32 %v1520, %v2460
        %v2480 = vmul.f32 %v1528, %v2459
        %v2481 = vmul.f32 %v1536, %v2461
        %v2482 = vmul.f32 %v1537, %v2452
        %v2483 = vmul.f32 %v1545, %v2460
        %v2484 = vmul.f32 %v1553, %v2459
        %v2485 = vmul.f32 %v1552, %v2461
        %v2486 = vmul.f32 %v1554, %v2452
        %v2487 = vmul.f32 %v1562, %v2460
        %v2488 = vmul.f32 %v1570, %v2459
        %v2489 = vmul.f32 %v1569, %v2461
        %v2490 = vmul.f32 %v1579, %v2452
        %v2491 = vmul.f32 %v1587, %v2460
        %v2492 = vmul.f32 %v1586, %v2459
        %v2493 = vmul.f32 %v1588, %v2461
        %v2494 = vmul.f32 %v1596, %v2452
        %v2495 = vmul.f32 %v1604, %v2460
        %v2496 = vmul.f32 %v1603, %v2459
        %v2497 = vmul.f32 %v1605, %v2461
        %v2498 = vmul.f32 %v1621, %v2452
        %v2499 = vmul.f32 %v1620, %v2460
        %v2500 = vmul.f32 %v1622, %v2459
        %v2501 = vmul.f32 %v1630, %v2461
        %v2502 = vmul.f32 %v1638, %v2452
        %v2503 = vmul.f32 %v1637, %v2460
        %v2504 = vmul.f32 %v1639, %v2459
        %v2505 = vmul.f32 %v1647, %v2461
        %v2506 = vmul.f32 %v1654, %v2452
        %v2507 = vmul.f32 %v1656, %v2460
        %v2508 = vmul.f32 %v1664, %v2459
        %v2509 = vmul.f32 %v1672, %v2461
        %v2510 = vmul.f32 %v1671, %v2452
        %v2511 = vmul.f32 %v1673, %v2460
        %v2512 = vmul.f32 %v1681, %v2459
        %v2513 = vmul.f32 %v1689, %v2461
        %v2514 = vmul.f32 %v1690, %v2452
        %v2515 = vmul.f32 %v1698, %v2460
        %v2516 = vmul.f32 %v1706, %v2459
        %v2517 = vmul.f32 %v1705, %v2461
        %v2518 = vmul.f32 %v1707, %v2452
        %v2519 = vmul.f32 %v1715, %v2460
        %v2520 = vmul.f32 %v1723, %v2459
        %v2521 = vmul.f32 %v1722, %v2461
        %v2522 = vmul.f32 %v1732, %v2452
        %v2523 = vmul.f32 %v1740, %v2460
        %v2524 = vmul.f32 %v1739, %v2459
        %v2525 = vmul.f32 %v1741, %v2461
        %v2526 = vmul.f32 %v1749, %v2452
        %v2527 = vmul.f32 %v1757, %v2460
        %v2528 = vmul.f32 %v1756, %v2459
        %v2529 = vmul.f32 %v1758, %v2461
        %v2530 = vadd.f32 %v2376, %v2466
        %v2531 = vadd.f32 %v2377, %v2467
        %v2532 = vadd.f32 %v2378, %v2468
        %v2533 = vadd.f32 %v2379, %v2469
        %v2534 = vadd.f32 %v2380, %v2470
        %v2535 = vadd.f32 %v2381, %v2471
        %v2536 = vadd.f32 %v2382, %v2472
        %v2537 = vadd.f32 %v2383, %v2473
        %v2538 = vadd.f32 %v2384, %v2474
        %v2539 = vadd.f32 %v2385, %v2475
        %v2540 = vadd.f32 %v2386, %v2476
        %v2541 = vadd.f32 %v2387, %v2477
        %v2542 = vadd.f32 %v2388, %v2478
        %v2543 = vadd.f32 %v2389, %v2479
        %v2544 = vadd.f32 %v2390, %v2480
        %v2545 = vadd.f32 %v2391, %v2481
        %v2546 = vadd.f32 %v2392, %v2482
        %v2547 = vadd.f32 %v2393, %v2483
        %v2548 = vadd.f32 %v2394, %v2484
        %v2549 = vadd.f32 %v2395, %v2485
        %v2550 = vadd.f32 %v2396, %v2486
        %v2551 = vadd.f32 %v2397, %v2487
        %v2552 = vadd.f32 %v2398, %v2488
        %v2553 = vadd.f32 %v2399, %v2489
        %v2554 = vadd.f32 %v2400, %v2490
        %v2555 = vadd.f32 %v2401, %v2491
        %v2556 = vadd.f32 %v2402, %v2492
        %v2557 = vadd.f32 %v2403, %v2493
        %v2558 = vadd.f32 %v2404, %v2494
        %v2559 = vadd.f32 %v2405, %v2495
        %v2560 = vadd.f32 %v2406, %v2496
        %v2561 = vadd.f32 %v2407, %v2497
        %v2562 = vadd.f32 %v2408, %v2498
        %v2563 = vadd.f32 %v2409, %v2499
        %v2564 = vadd.f32 %v2410, %v2500
        %v2565 = vadd.f32 %v2411, %v2501
        %v2566 = vadd.f32 %v2412, %v2502
        %v2567 = vadd.f32 %v2413, %v2503
        %v2568 = vadd.f32 %v2414, %v2504
        %v2569 = vadd.f32 %v2415, %v2505
        %v2570 = vadd.f32 %v2416, %v2506
        %v2571 = vadd.f32 %v2417, %v2507
        %v2572 = vadd.f32 %v2418, %v2508
        %v2573 = vadd.f32 %v2419, %v2509
        %v2574 = vadd.f32 %v2420, %v2510
        %v2575 = vadd.f32 %v2421, %v2511
        %v2576 = vadd.f32 %v2422, %v2512
        %v2577 = vadd.f32 %v2423, %v2513
        %v2578 = vadd.f32 %v2424, %v2514
        %v2579 = vadd.f32 %v2425, %v2515
        %v2580 = vadd.f32 %v2426, %v2516
        %v2581 = vadd.f32 %v2427, %v2517
        %v2582 = vadd.f32 %v2428, %v2518
        %v2583 = vadd.f32 %v2429, %v2519
        %v2584 = vadd.f32 %v2430, %v2520
        %v2585 = vadd.f32 %v2431, %v2521
        %v2586 = vadd.f32 %v2432, %v2522
        %v2587 = vadd.f32 %v2433, %v2523
        %v2588 = vadd.f32 %v2434, %v2524
        %v2589 = vadd.f32 %v2435, %v2525
        %v2590 = vadd.f32 %v2436, %v2526
        %v2591 = vadd.f32 %v2437, %v2527
        %v2592 = vadd.f32 %v2438, %v2528
        %v2593 = vadd.f32 %v2439, %v2529
        %v2658 = vcombine.low %v2530, %v2531
        %v2659 = vcombine.low %v2532, %v2533
        %v2661 = vunpack.c.l.s4 1983009808
        %v2662 = vunpack.c.0.s8 %v2661
        %v2663 = vlaneseq
        %v2664 = vshrl.u32 %v2663, 7
        %v2665 = vsub.s32 %v2662, %v2664
        %v2666 = vrot.slane %v2658, %v2665
        %v2668 = vunpack.c.l.s4 1983009808
        %v2669 = vunpack.c.0.s8 %v2668
        %v2670 = vlaneseq
        %v2671 = vshrl.u32 %v2670, 7
        %v2672 = vsub.s32 %v2669, %v2671
        %v2673 = vrot.slane %v2659, %v2672
        %v2674 = vcombine.low %v2666, %v2673
        %v2675 = vcombine.low %v2534, %v2535
        %v2676 = vcombine.low %v2536, %v2537
        %v2678 = vunpack.c.l.s4 1983009808
        %v2679 = vunpack.c.0.s8 %v2678
        %v2680 = vlaneseq
        %v2681 = vshrl.u32 %v2680, 7
        %v2682 = vsub.s32 %v2679, %v2681
        %v2683 = vrot.slane %v2675, %v2682
        %v2685 = vunpack.c.l.s4 1983009808
        %v2686 = vunpack.c.0.s8 %v2685
        %v2687 = vlaneseq
        %v2688 = vshrl.u32 %v2687, 7
        %v2689 = vsub.s32 %v2686, %v2688
        %v2690 = vrot.slane %v2676, %v2689
        %v2691 = vcombine.low %v2683, %v2690
        %v2692 = vcombine.low %v2538, %v2539
        %v2693 = vcombine.low %v2540, %v2541
        %v2695 = vunpack.c.l.s4 1983009808
        %v2696 = vunpack.c.0.s8 %v2695
        %v2697 = vlaneseq
        %v2698 = vshrl.u32 %v2697, 7
        %v2699 = vsub.s32 %v2696, %v2698
        %v2700 = vrot.slane %v2692, %v2699
        %v2702 = vunpack.c.l.s4 1983009808
        %v2703 = vunpack.c.0.s8 %v2702
        %v2704 = vlaneseq
        %v2705 = vshrl.u32 %v2704, 7
        %v2706 = vsub.s32 %v2703, %v2705
        %v2707 = vrot.slane %v2693, %v2706
        %v2708 = vcombine.low %v2700, %v2707
        %v2709 = vcombine.low %v2542, %v2543
        %v2710 = vcombine.low %v2544, %v2545
        %v2712 = vunpack.c.l.s4 1983009808
        %v2713 = vunpack.c.0.s8 %v2712
        %v2714 = vlaneseq
        %v2715 = vshrl.u32 %v2714, 7
        %v2716 = vsub.s32 %v2713, %v2715
        %v2717 = vrot.slane %v2709, %v2716
        %v2719 = vunpack.c.l.s4 1983009808
        %v2720 = vunpack.c.0.s8 %v2719
        %v2721 = vlaneseq
        %v2722 = vshrl.u32 %v2721, 7
        %v2723 = vsub.s32 %v2720, %v2722
        %v2724 = vrot.slane %v2710, %v2723
        %v2725 = vcombine.low %v2717, %v2724
        %v2726 = vcombine.low %v2546, %v2547
        %v2727 = vcombine.low %v2548, %v2549
        %v2729 = vunpack.c.l.s4 1983009808
        %v2730 = vunpack.c.0.s8 %v2729
        %v2731 = vlaneseq
        %v2732 = vshrl.u32 %v2731, 7
        %v2733 = vsub.s32 %v2730, %v2732
        %v2734 = vrot.slane %v2726, %v2733
        %v2736 = vunpack.c.l.s4 1983009808
        %v2737 = vunpack.c.0.s8 %v2736
        %v2738 = vlaneseq
        %v2739 = vshrl.u32 %v2738, 7
        %v2740 = vsub.s32 %v2737, %v2739
        %v2741 = vrot.slane %v2727, %v2740
        %v2742 = vcombine.low %v2734, %v2741
        %v2743 = vcombine.low %v2550, %v2551
        %v2744 = vcombine.low %v2552, %v2553
        %v2746 = vunpack.c.l.s4 1983009808
        %v2747 = vunpack.c.0.s8 %v2746
        %v2748 = vlaneseq
        %v2749 = vshrl.u32 %v2748, 7
        %v2750 = vsub.s32 %v2747, %v2749
        %v2751 = vrot.slane %v2743, %v2750
        %v2753 = vunpack.c.l.s4 1983009808
        %v2754 = vunpack.c.0.s8 %v2753
        %v2755 = vlaneseq
        %v2756 = vshrl.u32 %v2755, 7
        %v2757 = vsub.s32 %v2754, %v2756
        %v2758 = vrot.slane %v2744, %v2757
        %v2759 = vcombine.low %v2751, %v2758
        %v2760 = vcombine.low %v2554, %v2555
        %v2761 = vcombine.low %v2556, %v2557
        %v2763 = vunpack.c.l.s4 1983009808
        %v2764 = vunpack.c.0.s8 %v2763
        %v2765 = vlaneseq
        %v2766 = vshrl.u32 %v2765, 7
        %v2767 = vsub.s32 %v2764, %v2766
        %v2768 = vrot.slane %v2760, %v2767
        %v2770 = vunpack.c.l.s4 1983009808
        %v2771 = vunpack.c.0.s8 %v2770
        %v2772 = vlaneseq
        %v2773 = vshrl.u32 %v2772, 7
        %v2774 = vsub.s32 %v2771, %v2773
        %v2775 = vrot.slane %v2761, %v2774
        %v2776 = vcombine.low %v2768, %v2775
        %v2777 = vcombine.low %v2558, %v2559
        %v2778 = vcombine.low %v2560, %v2561
        %v2780 = vunpack.c.l.s4 1983009808
        %v2781 = vunpack.c.0.s8 %v2780
        %v2782 = vlaneseq
        %v2783 = vshrl.u32 %v2782, 7
        %v2784 = vsub.s32 %v2781, %v2783
        %v2785 = vrot.slane %v2777, %v2784
        %v2787 = vunpack.c.l.s4 1983009808
        %v2788 = vunpack.c.0.s8 %v2787
        %v2789 = vlaneseq
        %v2790 = vshrl.u32 %v2789, 7
        %v2791 = vsub.s32 %v2788, %v2790
        %v2792 = vrot.slane %v2778, %v2791
        %v2793 = vcombine.low %v2785, %v2792
        %v2794 = vcombine.low %v2562, %v2563
        %v2795 = vcombine.low %v2564, %v2565
        %v2797 = vunpack.c.l.s4 1983009808
        %v2798 = vunpack.c.0.s8 %v2797
        %v2799 = vlaneseq
        %v2800 = vshrl.u32 %v2799, 7
        %v2801 = vsub.s32 %v2798, %v2800
        %v2802 = vrot.slane %v2794, %v2801
        %v2804 = vunpack.c.l.s4 1983009808
        %v2805 = vunpack.c.0.s8 %v2804
        %v2806 = vlaneseq
        %v2807 = vshrl.u32 %v2806, 7
        %v2808 = vsub.s32 %v2805, %v2807
        %v2809 = vrot.slane %v2795, %v2808
        %v2810 = vcombine.low %v2802, %v2809
        %v2811 = vcombine.low %v2566, %v2567
        %v2812 = vcombine.low %v2568, %v2569
        %v2814 = vunpack.c.l.s4 1983009808
        %v2815 = vunpack.c.0.s8 %v2814
        %v2816 = vlaneseq
        %v2817 = vshrl.u32 %v2816, 7
        %v2818 = vsub.s32 %v2815, %v2817
        %v2819 = vrot.slane %v2811, %v2818
        %v2821 = vunpack.c.l.s4 1983009808
        %v2822 = vunpack.c.0.s8 %v2821
        %v2823 = vlaneseq
        %v2824 = vshrl.u32 %v2823, 7
        %v2825 = vsub.s32 %v2822, %v2824
        %v2826 = vrot.slane %v2812, %v2825
        %v2827 = vcombine.low %v2819, %v2826
        %v2828 = vcombine.low %v2570, %v2571
        %v2829 = vcombine.low %v2572, %v2573
        %v2831 = vunpack.c.l.s4 1983009808
        %v2832 = vunpack.c.0.s8 %v2831
        %v2833 = vlaneseq
        %v2834 = vshrl.u32 %v2833, 7
        %v2835 = vsub.s32 %v2832, %v2834
        %v2836 = vrot.slane %v2828, %v2835
        %v2838 = vunpack.c.l.s4 1983009808
        %v2839 = vunpack.c.0.s8 %v2838
        %v2840 = vlaneseq
        %v2841 = vshrl.u32 %v2840, 7
        %v2842 = vsub.s32 %v2839, %v2841
        %v2843 = vrot.slane %v2829, %v2842
        %v2844 = vcombine.low %v2836, %v2843
        %v2845 = vcombine.low %v2574, %v2575
        %v2846 = vcombine.low %v2576, %v2577
        %v2848 = vunpack.c.l.s4 1983009808
        %v2849 = vunpack.c.0.s8 %v2848
        %v2850 = vlaneseq
        %v2851 = vshrl.u32 %v2850, 7
        %v2852 = vsub.s32 %v2849, %v2851
        %v2853 = vrot.slane %v2845, %v2852
        %v2855 = vunpack.c.l.s4 1983009808
        %v2856 = vunpack.c.0.s8 %v2855
        %v2857 = vlaneseq
        %v2858 = vshrl.u32 %v2857, 7
        %v2859 = vsub.s32 %v2856, %v2858
        %v2860 = vrot.slane %v2846, %v2859
        %v2861 = vcombine.low %v2853, %v2860
        %v2862 = vcombine.low %v2578, %v2579
        %v2863 = vcombine.low %v2580, %v2581
        %v2865 = vunpack.c.l.s4 1983009808
        %v2866 = vunpack.c.0.s8 %v2865
        %v2867 = vlaneseq
        %v2868 = vshrl.u32 %v2867, 7
        %v2869 = vsub.s32 %v2866, %v2868
        %v2870 = vrot.slane %v2862, %v2869
        %v2872 = vunpack.c.l.s4 1983009808
        %v2873 = vunpack.c.0.s8 %v2872
        %v2874 = vlaneseq
        %v2875 = vshrl.u32 %v2874, 7
        %v2876 = vsub.s32 %v2873, %v2875
        %v2877 = vrot.slane %v2863, %v2876
        %v2878 = vcombine.low %v2870, %v2877
        %v2879 = vcombine.low %v2582, %v2583
        %v2880 = vcombine.low %v2584, %v2585
        %v2882 = vunpack.c.l.s4 1983009808
        %v2883 = vunpack.c.0.s8 %v2882
        %v2884 = vlaneseq
        %v2885 = vshrl.u32 %v2884, 7
        %v2886 = vsub.s32 %v2883, %v2885
        %v2887 = vrot.slane %v2879, %v2886
        %v2889 = vunpack.c.l.s4 1983009808
        %v2890 = vunpack.c.0.s8 %v2889
        %v2891 = vlaneseq
        %v2892 = vshrl.u32 %v2891, 7
        %v2893 = vsub.s32 %v2890, %v2892
        %v2894 = vrot.slane %v2880, %v2893
        %v2895 = vcombine.low %v2887, %v2894
        %v2896 = vcombine.low %v2586, %v2587
        %v2897 = vcombine.low %v2588, %v2589
        %v2899 = vunpack.c.l.s4 1983009808
        %v2900 = vunpack.c.0.s8 %v2899
        %v2901 = vlaneseq
        %v2902 = vshrl.u32 %v2901, 7
        %v2903 = vsub.s32 %v2900, %v2902
        %v2904 = vrot.slane %v2896, %v2903
        %v2906 = vunpack.c.l.s4 1983009808
        %v2907 = vunpack.c.0.s8 %v2906
        %v2908 = vlaneseq
        %v2909 = vshrl.u32 %v2908, 7
        %v2910 = vsub.s32 %v2907, %v2909
        %v2911 = vrot.slane %v2897, %v2910
        %v2912 = vcombine.low %v2904, %v2911
        %v2913 = vcombine.low %v2590, %v2591
        %v2914 = vcombine.low %v2592, %v2593
        %v2916 = vunpack.c.l.s4 1983009808
        %v2917 = vunpack.c.0.s8 %v2916
        %v2918 = vlaneseq
        %v2919 = vshrl.u32 %v2918, 7
        %v2920 = vsub.s32 %v2917, %v2919
        %v2921 = vrot.slane %v2913, %v2920
        %v2923 = vunpack.c.l.s4 1983009808
        %v2924 = vunpack.c.0.s8 %v2923
        %v2925 = vlaneseq
        %v2926 = vshrl.u32 %v2925, 7
        %v2927 = vsub.s32 %v2924, %v2926
        %v2928 = vrot.slane %v2914, %v2927
        %v2929 = vcombine.low %v2921, %v2928
        %vm2946 = vcmask 130048
        %v2947 = vsel %vm2946, %v2674, 0.0
        %2948 = vadd.xlane.f32.xlu0 %v2947
        %v2949 = vpop.xlane.xlu0 %2948
        %v2950 = vsel %vm2946, %v2691, 0.0
        %2951 = vadd.xlane.f32.xlu0 %v2950
        %v2952 = vpop.xlane.xlu0 %2951
        %v2953 = vsel %vm2946, %v2708, 0.0
        %2954 = vadd.xlane.f32.xlu0 %v2953
        %v2955 = vpop.xlane.xlu0 %2954
        %v2956 = vsel %vm2946, %v2725, 0.0
        %2957 = vadd.xlane.f32.xlu0 %v2956
        %v2958 = vpop.xlane.xlu0 %2957
        %v2959 = vsel %vm2946, %v2742, 0.0
        %2960 = vadd.xlane.f32.xlu0 %v2959
        %v2961 = vpop.xlane.xlu0 %2960
        %v2962 = vsel %vm2946, %v2759, 0.0
        %2963 = vadd.xlane.f32.xlu0 %v2962
        %v2964 = vpop.xlane.xlu0 %2963
        %v2965 = vsel %vm2946, %v2776, 0.0
        %2966 = vadd.xlane.f32.xlu0 %v2965
        %v2967 = vpop.xlane.xlu0 %2966
        %v2968 = vsel %vm2946, %v2793, 0.0
        %2969 = vadd.xlane.f32.xlu0 %v2968
        %v2970 = vpop.xlane.xlu0 %2969
        %v2971 = vsel %vm2946, %v2810, 0.0
        %2972 = vadd.xlane.f32.xlu0 %v2971
        %v2973 = vpop.xlane.xlu0 %2972
        %v2974 = vsel %vm2946, %v2827, 0.0
        %2975 = vadd.xlane.f32.xlu0 %v2974
        %v2976 = vpop.xlane.xlu0 %2975
        %v2977 = vsel %vm2946, %v2844, 0.0
        %2978 = vadd.xlane.f32.xlu0 %v2977
        %v2979 = vpop.xlane.xlu0 %2978
        %v2980 = vsel %vm2946, %v2861, 0.0
        %2981 = vadd.xlane.f32.xlu0 %v2980
        %v2982 = vpop.xlane.xlu0 %2981
        %v2983 = vsel %vm2946, %v2878, 0.0
        %2984 = vadd.xlane.f32.xlu0 %v2983
        %v2985 = vpop.xlane.xlu0 %2984
        %v2986 = vsel %vm2946, %v2895, 0.0
        %2987 = vadd.xlane.f32.xlu0 %v2986
        %v2988 = vpop.xlane.xlu0 %2987
        %v2989 = vsel %vm2946, %v2912, 0.0
        %2990 = vadd.xlane.f32.xlu0 %v2989
        %v2991 = vpop.xlane.xlu0 %2990
        %v2992 = vsel %vm2946, %v2929, 0.0
        %2993 = vadd.xlane.f32.xlu0 %v2992
        %v2994 = vpop.xlane.xlu0 %2993
        %v2995 = vld [vmem:[#allocation2] sm:$0x1]
        %v2997 = vlaneseq
        %v2998 = vshrl.u32 %v2997, 7
        %v2999 = vsub.s32 0, %v2998
        %v3000 = vrot.slane %v2995, %v2999
        %3001 = vset.pattern.permute.xlu0 0
        %3002 = vperm.xlu0 %3001, %v3000
        %v3003 = vpop.permute.xlu0 %3002
        %v3005 = vadd.f32 %v2949, %v3003
        %v3006 = vadd.f32 %v2952, %v3003
        %v3007 = vadd.f32 %v2955, %v3003
        %v3008 = vadd.f32 %v2958, %v3003
        %v3009 = vadd.f32 %v2961, %v3003
        %v3010 = vadd.f32 %v2964, %v3003
        %v3011 = vadd.f32 %v2967, %v3003
        %v3012 = vadd.f32 %v2970, %v3003
        %v3013 = vadd.f32 %v2973, %v3003
        %v3014 = vadd.f32 %v2976, %v3003
        %v3015 = vadd.f32 %v2979, %v3003
        %v3016 = vadd.f32 %v2982, %v3003
        %v3017 = vadd.f32 %v2985, %v3003
        %v3018 = vadd.f32 %v2988, %v3003
        %v3019 = vadd.f32 %v2991, %v3003
        %v3020 = vadd.f32 %v2994, %v3003
        %v3021 = vmax.f32 %v3005, 0.0
        %v3022 = vmax.f32 %v3006, 0.0
        %v3023 = vmax.f32 %v3007, 0.0
        %v3024 = vmax.f32 %v3008, 0.0
        %v3025 = vmax.f32 %v3009, 0.0
        %v3026 = vmax.f32 %v3010, 0.0
        %v3027 = vmax.f32 %v3011, 0.0
        %v3028 = vmax.f32 %v3012, 0.0
        %v3029 = vmax.f32 %v3013, 0.0
        %v3030 = vmax.f32 %v3014, 0.0
        %v3031 = vmax.f32 %v3015, 0.0
        %v3032 = vmax.f32 %v3016, 0.0
        %v3033 = vmax.f32 %v3017, 0.0
        %v3034 = vmax.f32 %v3018, 0.0
        %v3035 = vmax.f32 %v3019, 0.0
        %v3036 = vmax.f32 %v3020, 0.0
        %v3037 = vld [vmem:[#allocation11] sm:$0xff]
        %v3038 = vld [vmem:[#allocation11 + $0x8] sm:$0xff]
        %v3039 = vld [vmem:[#allocation11 + $0x10] sm:$0xff]
        %v3040 = vld [vmem:[#allocation11 + $0x18] sm:$0xff]
        %v3041 = vld [vmem:[#allocation12] sm:$0x3]
        %v3043 = vlaneseq
        %v3044 = vshrl.u32 %v3043, 7
        %v3045 = vsub.s32 0, %v3044
        %v3046 = vrot.slane %v3041, %v3045
        %v3047 = vlaneseq
        %v3048 = vshrl.u32 %v3047, 7
        %v3049 = vsub.s32 1, %v3048
        %v3050 = vrot.slane %v3041, %v3049
        %v3069 = vlaneseq
        %v3070 = vand.u32 %v3069, 127
        %v3071 = vlaneseq
        %v3072 = vshrl.u32 %v3071, 7
        %v3073 = vsub.s32 %v3070, %v3072
        %v3074 = vrot.slane %v3021, %v3073
        %v3075 = vadd.s32 %v3070, 4294967288
        %v3076 = vlaneseq
        %v3077 = vshrl.u32 %v3076, 7
        %v3078 = vsub.s32 %v3075, %v3077
        %v3079 = vrot.slane %v3022, %v3078
        %vm3080 = vcmask 130112
        %v3081 = vsel %vm3080, %v3079, %v3074
        %v3082 = vlaneseq
        %v3083 = vshrl.u32 %v3082, 7
        %v3084 = vsub.s32 %v3070, %v3083
        %v3085 = vrot.slane %v3023, %v3084
        %v3086 = vlaneseq
        %v3087 = vshrl.u32 %v3086, 7
        %v3088 = vsub.s32 %v3075, %v3087
        %v3089 = vrot.slane %v3024, %v3088
        %v3090 = vsel %vm3080, %v3089, %v3085
        %v3091 = vlaneseq
        %v3092 = vshrl.u32 %v3091, 7
        %v3093 = vsub.s32 %v3070, %v3092
        %v3094 = vrot.slane %v3025, %v3093
        %v3095 = vlaneseq
        %v3096 = vshrl.u32 %v3095, 7
        %v3097 = vsub.s32 %v3075, %v3096
        %v3098 = vrot.slane %v3026, %v3097
        %v3099 = vsel %vm3080, %v3098, %v3094
        %v3100 = vlaneseq
        %v3101 = vshrl.u32 %v3100, 7
        %v3102 = vsub.s32 %v3070, %v3101
        %v3103 = vrot.slane %v3027, %v3102
        %v3104 = vlaneseq
        %v3105 = vshrl.u32 %v3104, 7
        %v3106 = vsub.s32 %v3075, %v3105
        %v3107 = vrot.slane %v3028, %v3106
        %v3108 = vsel %vm3080, %v3107, %v3103
        %v3109 = vlaneseq
        %v3110 = vshrl.u32 %v3109, 7
        %v3111 = vsub.s32 %v3070, %v3110
        %v3112 = vrot.slane %v3029, %v3111
        %v3113 = vlaneseq
        %v3114 = vshrl.u32 %v3113, 7
        %v3115 = vsub.s32 %v3075, %v3114
        %v3116 = vrot.slane %v3030, %v3115
        %v3117 = vsel %vm3080, %v3116, %v3112
        %v3118 = vlaneseq
        %v3119 = vshrl.u32 %v3118, 7
        %v3120 = vsub.s32 %v3070, %v3119
        %v3121 = vrot.slane %v3031, %v3120
        %v3122 = vlaneseq
        %v3123 = vshrl.u32 %v3122, 7
        %v3124 = vsub.s32 %v3075, %v3123
        %v3125 = vrot.slane %v3032, %v3124
        %v3126 = vsel %vm3080, %v3125, %v3121
        %v3127 = vlaneseq
        %v3128 = vshrl.u32 %v3127, 7
        %v3129 = vsub.s32 %v3070, %v3128
        %v3130 = vrot.slane %v3033, %v3129
        %v3131 = vlaneseq
        %v3132 = vshrl.u32 %v3131, 7
        %v3133 = vsub.s32 %v3075, %v3132
        %v3134 = vrot.slane %v3034, %v3133
        %v3135 = vsel %vm3080, %v3134, %v3130
        %v3136 = vlaneseq
        %v3137 = vshrl.u32 %v3136, 7
        %v3138 = vsub.s32 %v3070, %v3137
        %v3139 = vrot.slane %v3035, %v3138
        %v3140 = vlaneseq
        %v3141 = vshrl.u32 %v3140, 7
        %v3142 = vsub.s32 %v3075, %v3141
        %v3143 = vrot.slane %v3036, %v3142
        %v3144 = vsel %vm3080, %v3143, %v3139
        %vm3145 = vcmask 1041409
        %v3146 = vsel %vm3145, %v3090, %v3081
        %v3147 = vsel %vm1944, %v3099, %v3146
        %vm3148 = vcmask 1043459
        %v3149 = vsel %vm3148, %v3108, %v3147
        %v3150 = vsel %vm1946, %v3117, %v3149
        %vm3151 = vcmask 1045509
        %v3152 = vsel %vm3151, %v3126, %v3150
        %v3153 = vsel %vm1948, %v3135, %v3152
        %vm3154 = vcmask 1047559
        %v3155 = vsel %vm3154, %v3144, %v3153
        %v3156 = vsel %vm2946, %v3155, 0
        %3158 = vmatprep.subr.mxu0 %v3038
        %3159 = vmatpush1.msra.mxu0 %v3037
        %3160 = vmatprep.subr.mxu0 %v3040
        %3161 = vmatpush1.msra.mxu0 %v3039
        %3162 = vmatprep.subr.mxu0 0.0
        %3163 = vmatpush1.msra.mxu0 0.0
        %3164 = vmatprep.subr.mxu0 0.0
        %3165 = vmatpush1.msra.mxu0 0.0
        %3166 = vmatprep.subr.mxu0 0.0
        %3167 = vmatpush1.msra.mxu0 0.0
        %3168 = vmatprep.subr.mxu0 0.0
        %3169 = vmatpush1.msra.mxu0 0.0
        %3170 = vmatprep.subr.mxu0 0.0
        %3171 = vmatpush1.msra.mxu0 0.0
        %3172 = vmatprep.subr.mxu0 0.0
        %3173 = vmatpush1.msra.mxu0 0.0
        %3174 = vmatprep.subr.mxu0 0.0
        %3175 = vmatpush1.msra.mxu0 0.0
        %3176 = vmatprep.subr.mxu0 0.0
        %3177 = vmatpush1.msra.mxu0 0.0
        %3178 = vmatprep.subr.mxu0 0.0
        %3179 = vmatpush1.msra.mxu0 0.0
        %3180 = vmatprep.subr.mxu0 0.0
        %3181 = vmatpush1.msra.mxu0 0.0
        %3182 = vmatprep.subr.mxu0 0.0
        %3183 = vmatpush1.msra.mxu0 0.0
        %3184 = vmatprep.subr.mxu0 0.0
        %3185 = vmatpush1.msra.mxu0 0.0
        %3186 = vmatprep.subr.mxu0 0.0
        %3187 = vmatpush1.msra.mxu0 0.0
        %3188 = vmatprep.subr.mxu0 0.0
        %3189 = vmatpush1.msra.mxu0 0.0
        %3190 = vmatprep.subr.mxu0 0.0
        %3191 = vmatpush1.msra.mxu0 0.0
        %3192 = vmatprep.subr.mxu0 0.0
        %3193 = vmatpush1.msra.mxu0 0.0
        %3194 = vmatprep.subr.mxu0 0.0
        %3195 = vmatpush1.msra.mxu0 0.0
        %3196 = vmatprep.subr.mxu0 0.0
        %3197 = vmatpush1.msra.mxu0 0.0
        %3198 = vmatprep.subr.mxu0 0.0
        %3199 = vmatpush1.msra.mxu0 0.0
        %3200 = vmatprep.subr.mxu0 0.0
        %3201 = vmatpush1.msra.mxu0 0.0
        %3202 = vmatprep.subr.mxu0 0.0
        %3203 = vmatpush1.msra.mxu0 0.0
        %3204 = vmatprep.subr.mxu0 0.0
        %3205 = vmatpush1.msra.mxu0 0.0
        %3206 = vmatprep.subr.mxu0 0.0
        %3207 = vmatpush1.msra.mxu0 0.0
        %3208 = vmatprep.subr.mxu0 0.0
        %3209 = vmatpush1.msra.mxu0 0.0
        %3210 = vmatprep.subr.mxu0 0.0
        %3211 = vmatpush1.msra.mxu0 0.0
        %3212 = vmatprep.subr.mxu0 0.0
        %3213 = vmatpush1.msra.mxu0 0.0
        %3214 = vmatprep.subr.mxu0 0.0
        %3215 = vmatpush1.msra.mxu0 0.0
        %3216 = vmatprep.subr.mxu0 0.0
        %3217 = vmatpush1.msra.mxu0 0.0
        %3218 = vmatprep.subr.mxu0 0.0
        %3219 = vmatpush1.msra.mxu0 0.0
        %3220 = vmatprep.subr.mxu0 0.0
        %3221 = vmatpush1.msra.mxu0 0.0
        %3222 = vmatprep.mubr.f32.mxu0 0.0
        %3223 = vmatmul.mubr.f32.gmra.mrb[0].mxu0 %v3156
        %v3224 = vpop.f32.mrb[0].mxu0
        %v3225 = vadd.f32 %v3046, %v3224
        %v3226 = vpop.f32.mrb[0].mxu0
        %v3227 = vadd.f32 %v3050, %v3226
        %3228 = vdwg.mxu0
        %v3229 = vmax.f32 %v3225, 0.0
        %v3230 = vmax.f32 %v3227, 0.0
        %v3231 = vld [vmem:[#allocation14] sm:$0xff]
        %v3232 = vld [vmem:[#allocation14 + $0x8] sm:$0xff]
        %v3233 = vld [vmem:[#allocation14 + $0x10] sm:$0xff]
        %v3234 = vld [vmem:[#allocation14 + $0x18] sm:$0xff]
        %v3235 = vld [vmem:[#allocation14 + $0x20] sm:$0xff]
        %v3236 = vld [vmem:[#allocation14 + $0x28] sm:$0xff]
        %v3237 = vld [vmem:[#allocation14 + $0x30] sm:$0xff]
        %v3238 = vld [vmem:[#allocation14 + $0x38] sm:$0xff]
        %v3239 = vld [vmem:[#allocation14 + $0x40] sm:$0xff]
        %v3240 = vld [vmem:[#allocation14 + $0x48] sm:$0xff]
        %v3241 = vld [vmem:[#allocation14 + $0x50] sm:$0xff]
        %v3242 = vld [vmem:[#allocation14 + $0x58] sm:$0xff]
        %v3243 = vld [vmem:[#allocation14 + $0x60] sm:$0xff]
        %v3244 = vld [vmem:[#allocation14 + $0x68] sm:$0xff]
        %v3245 = vld [vmem:[#allocation14 + $0x70] sm:$0xff]
        %v3246 = vld [vmem:[#allocation14 + $0x78] sm:$0xff]
        %v3247 = vld [vmem:[#allocation14 + $0x80] sm:$0xff]
        %v3248 = vld [vmem:[#allocation14 + $0x88] sm:$0xff]
        %v3249 = vld [vmem:[#allocation14 + $0x90] sm:$0xff]
        %v3250 = vld [vmem:[#allocation14 + $0x98] sm:$0xff]
        %v3251 = vld [vmem:[#allocation14 + $0xa0] sm:$0xff]
        %v3252 = vld [vmem:[#allocation14 + $0xa8] sm:$0xff]
        %v3253 = vld [vmem:[#allocation14 + $0xb0] sm:$0xff]
        %v3254 = vld [vmem:[#allocation14 + $0xb8] sm:$0xff]
        %v3255 = vld [vmem:[#allocation14 + $0xc0] sm:$0xff]
        %v3256 = vld [vmem:[#allocation14 + $0xc8] sm:$0xff]
        %v3257 = vld [vmem:[#allocation14 + $0xd0] sm:$0xff]
        %v3258 = vld [vmem:[#allocation14 + $0xd8] sm:$0xff]
        %v3259 = vld [vmem:[#allocation14 + $0xe0] sm:$0xff]
        %v3260 = vld [vmem:[#allocation14 + $0xe8] sm:$0xff]
        %v3261 = vld [vmem:[#allocation14 + $0xf0] sm:$0xff]
        %v3262 = vld [vmem:[#allocation14 + $0xf8] sm:$0xff]
        %v3263 = vld [vmem:[#allocation15] sm:$0x1]
        %v3265 = vlaneseq
        %v3266 = vshrl.u32 %v3265, 7
        %v3267 = vsub.s32 0, %v3266
        %v3268 = vrot.slane %v3263, %v3267
        %3270 = vmatprep.subr.mxu0 0.0
        %3271 = vmatpush1.msra.mxu0 %v3231
        %3272 = vmatprep.subr.mxu0 0.0
        %3273 = vmatpush1.msra.mxu0 %v3232
        %3274 = vmatprep.subr.mxu0 0.0
        %3275 = vmatpush1.msra.mxu0 %v3233
        %3276 = vmatprep.subr.mxu0 0.0
        %3277 = vmatpush1.msra.mxu0 %v3234
        %3278 = vmatprep.subr.mxu0 0.0
        %3279 = vmatpush1.msra.mxu0 %v3235
        %3280 = vmatprep.subr.mxu0 0.0
        %3281 = vmatpush1.msra.mxu0 %v3236
        %3282 = vmatprep.subr.mxu0 0.0
        %3283 = vmatpush1.msra.mxu0 %v3237
        %3284 = vmatprep.subr.mxu0 0.0
        %3285 = vmatpush1.msra.mxu0 %v3238
        %3286 = vmatprep.subr.mxu0 0.0
        %3287 = vmatpush1.msra.mxu0 %v3239
        %3288 = vmatprep.subr.mxu0 0.0
        %3289 = vmatpush1.msra.mxu0 %v3240
        %3290 = vmatprep.subr.mxu0 0.0
        %3291 = vmatpush1.msra.mxu0 %v3241
        %3292 = vmatprep.subr.mxu0 0.0
        %3293 = vmatpush1.msra.mxu0 %v3242
        %3294 = vmatprep.subr.mxu0 0.0
        %3295 = vmatpush1.msra.mxu0 %v3243
        %3296 = vmatprep.subr.mxu0 0.0
        %3297 = vmatpush1.msra.mxu0 %v3244
        %3298 = vmatprep.subr.mxu0 0.0
        %3299 = vmatpush1.msra.mxu0 %v3245
        %3300 = vmatprep.subr.mxu0 0.0
        %3301 = vmatpush1.msra.mxu0 %v3246
        %3302 = vmatprep.subr.mxu0 0.0
        %3303 = vmatpush1.msra.mxu0 %v3247
        %3304 = vmatprep.subr.mxu0 0.0
        %3305 = vmatpush1.msra.mxu0 %v3248
        %3306 = vmatprep.subr.mxu0 0.0
        %3307 = vmatpush1.msra.mxu0 %v3249
        %3308 = vmatprep.subr.mxu0 0.0
        %3309 = vmatpush1.msra.mxu0 %v3250
        %3310 = vmatprep.subr.mxu0 0.0
        %3311 = vmatpush1.msra.mxu0 %v3251
        %3312 = vmatprep.subr.mxu0 0.0
        %3313 = vmatpush1.msra.mxu0 %v3252
        %3314 = vmatprep.subr.mxu0 0.0
        %3315 = vmatpush1.msra.mxu0 %v3253
        %3316 = vmatprep.subr.mxu0 0.0
        %3317 = vmatpush1.msra.mxu0 %v3254
        %3318 = vmatprep.subr.mxu0 0.0
        %3319 = vmatpush1.msra.mxu0 %v3255
        %3320 = vmatprep.subr.mxu0 0.0
        %3321 = vmatpush1.msra.mxu0 %v3256
        %3322 = vmatprep.subr.mxu0 0.0
        %3323 = vmatpush1.msra.mxu0 %v3257
        %3324 = vmatprep.subr.mxu0 0.0
        %3325 = vmatpush1.msra.mxu0 %v3258
        %3326 = vmatprep.subr.mxu0 0.0
        %3327 = vmatpush1.msra.mxu0 %v3259
        %3328 = vmatprep.subr.mxu0 0.0
        %3329 = vmatpush1.msra.mxu0 %v3260
        %3330 = vmatprep.subr.mxu0 0.0
        %3331 = vmatpush1.msra.mxu0 %v3261
        %3332 = vmatprep.subr.mxu0 0.0
        %3333 = vmatpush1.msra.mxu0 %v3262
        %3334 = vmatprep.mubr.f32.mxu0 %v3230
        %3335 = vmatmul.mubr.f32.gmra.mrb[0].mxu0 %v3229
        %v3336 = vpop.f32.mrb[0].mxu0
        %v3337 = vadd.f32 %v3268, %v3336
        %v3338 = vpop.f32.mrb[0].mxu0
        %3339 = vdwg.mxu0
        %v3340 = vmax.f32 %v3337, 0.0
        %v3341 = vld [vmem:[#allocation17] sm:$0xff]
        %v3342 = vld [vmem:[#allocation17 + $0x8] sm:$0xff]
        %v3343 = vld [vmem:[#allocation17 + $0x10] sm:$0xff]
        %v3344 = vld [vmem:[#allocation17 + $0x18] sm:$0xff]
        %v3345 = vld [vmem:[#allocation17 + $0x20] sm:$0xff]
        %v3346 = vld [vmem:[#allocation17 + $0x28] sm:$0xff]
        %v3347 = vld [vmem:[#allocation17 + $0x30] sm:$0xff]
        %v3348 = vld [vmem:[#allocation17 + $0x38] sm:$0xff]
        %v3349 = vld [vmem:[#allocation17 + $0x40] sm:$0xff]
        %v3350 = vld [vmem:[#allocation17 + $0x48] sm:$0xff]
        %v3351 = vld [vmem:[#allocation17 + $0x50] sm:$0xff]
        %v3352 = vld [vmem:[#allocation17 + $0x58] sm:$0xff]
        %v3353 = vld [vmem:[#allocation17 + $0x60] sm:$0xff]
        %v3354 = vld [vmem:[#allocation17 + $0x68] sm:$0xff]
        %v3355 = vld [vmem:[#allocation17 + $0x70] sm:$0xff]
        %v3356 = vld [vmem:[#allocation17 + $0x78] sm:$0xff]
        %v3357 = vld [vmem:[#allocation18] sm:$0x1]
        %v3359 = vlaneseq
        %v3360 = vshrl.u32 %v3359, 7
        %v3361 = vsub.s32 0, %v3360
        %v3362 = vrot.slane %v3357, %v3361
        %3364 = vmatprep.subr.mxu0 0.0
        %3365 = vmatpush1.msra.mxu0 %v3341
        %3366 = vmatprep.subr.mxu0 0.0
        %3367 = vmatpush1.msra.mxu0 %v3342
        %3368 = vmatprep.subr.mxu0 0.0
        %3369 = vmatpush1.msra.mxu0 %v3343
        %3370 = vmatprep.subr.mxu0 0.0
        %3371 = vmatpush1.msra.mxu0 %v3344
        %3372 = vmatprep.subr.mxu0 0.0
        %3373 = vmatpush1.msra.mxu0 %v3345
        %3374 = vmatprep.subr.mxu0 0.0
        %3375 = vmatpush1.msra.mxu0 %v3346
        %3376 = vmatprep.subr.mxu0 0.0
        %3377 = vmatpush1.msra.mxu0 %v3347
        %3378 = vmatprep.subr.mxu0 0.0
        %3379 = vmatpush1.msra.mxu0 %v3348
        %3380 = vmatprep.subr.mxu0 0.0
        %3381 = vmatpush1.msra.mxu0 %v3349
        %3382 = vmatprep.subr.mxu0 0.0
        %3383 = vmatpush1.msra.mxu0 %v3350
        %3384 = vmatprep.subr.mxu0 0.0
        %3385 = vmatpush1.msra.mxu0 %v3351
        %3386 = vmatprep.subr.mxu0 0.0
        %3387 = vmatpush1.msra.mxu0 %v3352
        %3388 = vmatprep.subr.mxu0 0.0
        %3389 = vmatpush1.msra.mxu0 %v3353
        %3390 = vmatprep.subr.mxu0 0.0
        %3391 = vmatpush1.msra.mxu0 %v3354
        %3392 = vmatprep.subr.mxu0 0.0
        %3393 = vmatpush1.msra.mxu0 %v3355
        %3394 = vmatprep.subr.mxu0 0.0
        %3395 = vmatpush1.msra.mxu0 %v3356
        %3396 = vmatprep.subr.mxu0 0.0
        %3397 = vmatpush1.msra.mxu0 0.0
        %3398 = vmatprep.subr.mxu0 0.0
        %3399 = vmatpush1.msra.mxu0 0.0
        %3400 = vmatprep.subr.mxu0 0.0
        %3401 = vmatpush1.msra.mxu0 0.0
        %3402 = vmatprep.subr.mxu0 0.0
        %3403 = vmatpush1.msra.mxu0 0.0
        %3404 = vmatprep.subr.mxu0 0.0
        %3405 = vmatpush1.msra.mxu0 0.0
        %3406 = vmatprep.subr.mxu0 0.0
        %3407 = vmatpush1.msra.mxu0 0.0
        %3408 = vmatprep.subr.mxu0 0.0
        %3409 = vmatpush1.msra.mxu0 0.0
        %3410 = vmatprep.subr.mxu0 0.0
        %3411 = vmatpush1.msra.mxu0 0.0
        %3412 = vmatprep.subr.mxu0 0.0
        %3413 = vmatpush1.msra.mxu0 0.0
        %3414 = vmatprep.subr.mxu0 0.0
        %3415 = vmatpush1.msra.mxu0 0.0
        %3416 = vmatprep.subr.mxu0 0.0
        %3417 = vmatpush1.msra.mxu0 0.0
        %3418 = vmatprep.subr.mxu0 0.0
        %3419 = vmatpush1.msra.mxu0 0.0
        %3420 = vmatprep.subr.mxu0 0.0
        %3421 = vmatpush1.msra.mxu0 0.0
        %3422 = vmatprep.subr.mxu0 0.0
        %3423 = vmatpush1.msra.mxu0 0.0
        %3424 = vmatprep.subr.mxu0 0.0
        %3425 = vmatpush1.msra.mxu0 0.0
        %3426 = vmatprep.subr.mxu0 0.0
        %3427 = vmatpush1.msra.mxu0 0.0
        %3428 = vmatprep.mubr.f32.mxu0 0.0
        %3429 = vmatmul.mubr.f32.gmra.mrb[0].mxu0 %v3340
        %v3430 = vpop.f32.mrb[0].mxu0
        %v3431 = vadd.f32 %v3362, %v3430
        %v3432 = vpop.f32.mrb[0].mxu0
        %3433 = vdwg.mxu0
        %vm3434 = vcmask 23552
        %v3435 = vsel %vm3434, %v3431, -inf
        %3436 = vmax.xlane.f32.xlu0 %v3435
        %v3437 = vpop.xlane.xlu0 %3436
        %v3438 = vsub.f32 %v3431, %v3437
        %v3439 = vmul.f32 %v3438, 1.442695
        %v3440 = vpow.pop %v3439
        %v3441 = vsel %vm3434, %v3440, 0.0
        %3442 = vadd.xlane.f32.xlu0 %v3441
        %v3443 = vpop.xlane.xlu0 %3442
        %v3444 = vrcp.pop %v3443
        %v3445 = vmul.f32 %v3440, %v3444
        %3446 = vst.msk [vmem:[%s528] sm:$0xff] %vm3434, %v3445
        %s3447 = sand.u32 %s279, 1
        %s3448 = scalar_lea.sflag [#allocation5], %s3447
        %s3449 = sand.u32 %s279, 1
        %s3450 = smul.addr %s3449, 8
        %s3451 = scalar_lea.vmem [#allocation20], %s3450
        // Predicated region
        $region105: #{classifier_forward.1} parent=63 // pred_check
          %p3452 = pneg %p289
        $region106: #{classifier_forward.1} parent=63 // pred_check_branch
          %3454 = sbr.rel (%p3452) target = $region108
        $region107: #{classifier_forward.1} parent=63 // pred_region
          %s3456 = ssub.s32 128, 128
          %3457 = vsyncadd %s3448, %s3456
          %s3458 = smul.addr %s35, 128
          %s3459 = scalar_lea.hbm %s11, %s3458
          %s3461 = sshll.u32 %s3451, 4
          %s3462 = int_to_ptr.vmem [resolvable:$true] %s3461
          %3464 = dma.vmem_to_hbm [thread:$0]  %s3462, 128, %s3459, %s3448
        $region108: #{classifier_forward.1} parent=63 // pred_fallthru
          _
      $region64: #{classifier_forward.1} parent=5 // pred_fallthru
        _
      %p3465 = scmp.le.s32.totalorder 2, %s30
      // Predicated region
      $region109: #{classifier_forward.1} parent=5 // pred_check
        %p3466 = pneg %p3465
      $region110: #{classifier_forward.1} parent=5 // pred_check_branch
        %3468 = sbr.rel (%p3466) target = $region112
      $region111: #{classifier_forward.1} parent=5 // pred_region
        %s3469 = ssub.s32 %s30, 2
        // Predicated region
        $region113: #{classifier_forward.1} parent=111 // pred_check
          %p3470 = pneg %p295
        $region114: #{classifier_forward.1} parent=111 // pred_check_branch
          %3472 = sbr.rel (%p3470) target = $region116
        $region115: #{classifier_forward.1} parent=111 // pred_region
          %s3473 = sand.u32 %s280, 1
          %s3474 = scalar_lea.sflag [#allocation5], %s3473
          %s3475 = sand.u32 %s280, 1
          %s3476 = smul.addr %s3475, 8
          %s3477 = scalar_lea.vmem [#allocation20], %s3476
          %3478 = dma.done %s3474, 128
        $region116: #{classifier_forward.1} parent=111 // pred_fallthru
          _
      $region112: #{classifier_forward.1} parent=5 // pred_fallthru
        _
    $region6: #{classifier_forward.1} parent=1 // loop_footer
      %s34 = sadd.s32 1, %s30
    $region7: #{classifier_forward.1} parent=1 // loop_footer_branch
      %29 = sbr.rel target = $region3
    $region8: #{classifier_forward.1} parent=1 // loop_exit
      _
    %3479 = vsyncpa [#allocation4], 1
    %s3480 = scalar_lea.sflag [#allocation4], 1
    %3481 = vsyncpa %s3480, 1
    %3482 = vsyncpa [#allocation7], 1
    %3483 = vsyncpa [#allocation10], 1
    %3484 = vsyncpa [#allocation13], 1
    %3485 = vsyncpa [#allocation16], 1
    %3486 = vsyncpa [#allocation19], 1
    %3487 = vsyncpa [#allocation5], 1
    %s3488 = scalar_lea.sflag [#allocation5], 1
    %3489 = vsyncpa %s3488, 1

</llo_original>
